<compile_context>
chip_gen: v7x
topology: tpu7x:2x2x1
jax: 0.10.0
libtpu: 0.0.40
codegen_flags: <defaults>
</compile_context>

<pallas_src>
import functools

import jax
import jax.numpy as jnp
from jax.experimental import pallas as pl
from jax.experimental.pallas import tpu as pltpu


# -----------------------------------------------------------------------------
# Generation-aware tiling helpers
# -----------------------------------------------------------------------------
@functools.lru_cache(maxsize=1)
def _multi_tensorcore():
    """True on chips where >=2 grid blocks map to >1 TensorCore (v4/v5p/v7x)."""
    try:
        kind = jax.devices()[0].device_kind.lower()
    except Exception:
        return False
    return any(tag in kind for tag in ("v4", "v5p", "v7", "7x"))


def _pick_tn(M, K, Cout, vmem_budget=8 << 20):
    """Column tile of the (K, M) patch matrix.

    Full-extent single block on single-TensorCore chips (v5e/v6e); two blocks on
    multi-TC chips so both cores get work; shrunk (keeping multiples of 128) to
    a conservative double-buffered VMEM budget.
    """
    if M % 128 != 0:
        return M                      # full extent is always a legal block
    tn = M
    if _multi_tensorcore() and M % 256 == 0:
        tn = M // 2

    def bytes_needed(t):
        # 2x (double-buffer) bf16 patch tile + 2x bf16 out tile + resident w, b
        return 2 * (K * t * 2) + 2 * (Cout * t * 2) + Cout * K * 2 + Cout * 4

    while bytes_needed(tn) > vmem_budget and tn % 256 == 0:
        tn //= 2
    return tn


def _compiler_params(K, Cout, tn):
    need = 2 * (K * tn * 2) + 2 * (Cout * tn * 2) + Cout * K * 2 + Cout * 4
    limit = int(min(max(4 * need, 16 << 20), 64 << 20))
    return pltpu.CompilerParams(dimension_semantics=("parallel",),
                                vmem_limit_bytes=limit)


# -----------------------------------------------------------------------------
# Pallas kernels
# -----------------------------------------------------------------------------
def _gemm_bias_relu_kernel(w_ref, p_ref, b_ref, o_ref):
    # w: (Cout, K) bf16 (BN scale pre-folded) ; p: (K, tn) bf16 ; b: (Cout, 1) f32
    acc = jnp.dot(w_ref[...], p_ref[...], preferred_element_type=jnp.float32)
    acc = acc + b_ref[...]
    o_ref[...] = jnp.maximum(acc, 0.0).astype(o_ref.dtype)


def _pool_head_kernel(x_ref, w_ref, b_ref, o_ref):
    # x: (C2, N, HW) bf16 ; w: (ncls, C2) f32 (BN scale folded) ; b: (ncls, 1)
    pooled = jnp.mean(x_ref[...].astype(jnp.float32), axis=-1)          # (C2, N)
    acc = jnp.dot(w_ref[...], pooled, preferred_element_type=jnp.float32)
    o_ref[...] = acc + b_ref[...]                                       # (ncls, N)


# -----------------------------------------------------------------------------
# Pallas wrappers
# -----------------------------------------------------------------------------
def gemm_bias_relu(wt, p, b, out_dtype=jnp.bfloat16):
    """out = relu(wt @ p + b); wt (Cout, K), p (K, M), b (Cout, 1) -> (Cout, M)."""
    Cout, K = wt.shape
    _, M = p.shape
    tn = _pick_tn(M, K, Cout)
    return pl.pallas_call(
        _gemm_bias_relu_kernel,
        out_shape=jax.ShapeDtypeStruct((Cout, M), out_dtype),
        grid=(M // tn,),
        in_specs=[
            pl.BlockSpec((Cout, K), lambda i: (0, 0)),   # resident weights
            pl.BlockSpec((K, tn), lambda i: (0, i)),     # lane-dense patch tile
            pl.BlockSpec((Cout, 1), lambda i: (0, 0)),   # bias
        ],
        out_specs=pl.BlockSpec((Cout, tn), lambda i: (0, i)),  # lane-dense store
        compiler_params=_compiler_params(K, Cout, tn),
    )(wt, p, b)


def pool_head(x, wt, b):
    """Global average over spatial, then 1x1 conv (BN scale folded) + BN bias."""
    C2, N, HW = x.shape
    ncls = wt.shape[0]
    return pl.pallas_call(
        _pool_head_kernel,
        out_shape=jax.ShapeDtypeStruct((ncls, N), jnp.float32),
        grid=(1,),
        in_specs=[
            pl.BlockSpec((C2, N, HW), lambda i: (0, 0, 0)),
            pl.BlockSpec((ncls, C2), lambda i: (0, 0)),
            pl.BlockSpec((ncls, 1), lambda i: (0, 0)),
        ],
        out_specs=pl.BlockSpec((ncls, N), lambda i: (0, 0)),
    )(x, wt, b)


# -----------------------------------------------------------------------------
# JAX glue: channel-major im2col, BN folding, stream/weight fusion
# -----------------------------------------------------------------------------
def im2col3x3_cm(x, stride):
    """x: (C, N, H, W) -> patches (9*C, N*Ho*Wo); tap order (dy, dx) row-major,
    per-tap row order = channel order of x (combined [res | trans])."""
    C, N, H, W = x.shape
    xp = jnp.pad(x, ((0, 0), (0, 0), (1, 1), (1, 1)))
    Ho = (H + 2 - 3) // stride + 1
    Wo = (W + 2 - 3) // stride + 1
    rows = []
    for dy in range(3):
        for dx in range(3):
            sl = xp[:, :, dy:dy + (Ho - 1) * stride + 1:stride,
                          dx:dx + (Wo - 1) * stride + 1:stride]
            rows.append(sl.reshape(C, N * Ho * Wo))
    return jnp.concatenate(rows, axis=0), (N, Ho, Wo)


def bn_fold(bn, eps=1e-5):
    scale = bn["gamma"] / jnp.sqrt(bn["var"] + eps)
    bias = bn["beta"] - bn["mean"] * scale
    return scale, bias


def prepare_fused_params(params):
    """Host-side (once): fold eval-mode BN scale into weight columns, fold the
    identity path into the centre 3x3 tap, cross-wire res/trans streams into one
    stacked weight and transpose everything to (Cout, K) for M-on-lanes GEMMs."""
    fused = {}

    # --- init block: two conv3x3_blocks sharing the input -> one GEMM ---------
    ib = params["init_block"]
    c0 = ib["res_w"].shape[-1]
    rs, rb = bn_fold(ib["res_bn"])
    ts, tb = bn_fold(ib["trans_bn"])
    w_init = jnp.concatenate([ib["res_w"].reshape(-1, c0) * rs,
                              ib["trans_w"].reshape(-1, c0) * ts], axis=1)  # (9Cin, 2C0)
    fused["init_wt"] = w_init.T.astype(jnp.bfloat16)                        # (2C0, 9Cin)
    fused["init_b"] = jnp.concatenate([rb, tb]).reshape(-1, 1)              # (2C0, 1)

    # --- RiR units -------------------------------------------------------------
    stages = []
    for stage_params in params["stages"]:
        stage = []
        for up in stage_params:
            in_c = up["res_pass_w"].shape[2]
            out_c = up["res_pass_w"].shape[3]
            rp = up["res_pass_w"].reshape(9, in_c, out_c)
            rc = up["res_cross_w"].reshape(9, in_c, out_c)
            tpw = up["trans_pass_w"].reshape(9, in_c, out_c)
            tcw = up["trans_cross_w"].reshape(9, in_c, out_c)
            # per tap: rows [res-inputs ; trans-inputs], cols [new_res | new_trans]
            #   new_res   = res_pass(x_res) + identity(x_res) + trans_cross(x_trans)
            #   new_trans = trans_pass(x_trans) + res_cross(x_res)
            top = jnp.concatenate([rp, rc], axis=2)      # res-input rows
            bot = jnp.concatenate([tcw, tpw], axis=2)    # trans-input rows
            w = jnp.concatenate([top, bot], axis=1).reshape(9 * 2 * in_c, 2 * out_c)
            # identity path (1x1 conv or passthrough) folds exactly into the
            # centre tap (dy=1, dx=1) of the res->res block (kernel=3, pad=1).
            ident = up.get("identity_w")
            if ident is None:
                ident = jnp.eye(in_c, out_c, dtype=jnp.float32)
            w = w.at[4 * 2 * in_c: 4 * 2 * in_c + in_c, :out_c].add(ident)
            rs, rb = bn_fold(up["res_bn"])
            ts, tb = bn_fold(up["trans_bn"])
            w = w * jnp.concatenate([rs, ts])[None, :]   # fold BN scale (f32)
            stage.append(dict(
                wt=w.T.astype(jnp.bfloat16),                       # (2out_c, 18*in_c)
                bias=jnp.concatenate([rb, tb]).reshape(-1, 1),     # (2out_c, 1)
            ))
        stages.append(stage)
    fused["stages"] = stages

    # --- head: 1x1 conv_block (no activation) with BN scale folded ------------
    fo = params["final_conv"]
    fs, fb = bn_fold(fo["bn"])
    fused["head_wt"] = (fo["w"] * fs).T.astype(jnp.float32)        # (ncls, 2C)
    fused["head_b"] = fb.reshape(-1, 1)                            # (ncls, 1)
    return fused


# -----------------------------------------------------------------------------
# Model forward
# -----------------------------------------------------------------------------
def cifar_rir_forward(x_nchw, fp):
    # NCHW -> channel-major (C, N, H, W); activations bf16; combined res|trans
    # stream lives on the leading channel axis, batch*spatial maps to lanes.
    x = jnp.transpose(x_nchw, (1, 0, 2, 3)).astype(jnp.bfloat16)

    # init block: one fused GEMM + bias + ReLU
    p, (N, Ho, Wo) = im2col3x3_cm(x, 1)
    z = gemm_bias_relu(fp["init_wt"], p, fp["init_b"])             # (2C0, M) bf16
    z = z.reshape(-1, N, Ho, Wo)

    # RiR stages: exactly one pallas_call per unit
    for si, stage in enumerate(fp["stages"]):
        for ui, up in enumerate(stage):
            stride = 2 if (ui == 0 and si != 0) else 1
            p, (N, Ho, Wo) = im2col3x3_cm(z, stride)
            z = gemm_bias_relu(up["wt"], p, up["bias"]).reshape(-1, N, Ho, Wo)

    # final block is just the channel concat (z already is [res | trans]);
    # AvgPool2d(8) over the 8x8 map == global mean, commuted before the 1x1
    # conv_block (exact: both affine, no activation between them).
    C2, Nb, H, W = z.shape
    logits = pool_head(z.reshape(C2, Nb, H * W), fp["head_wt"], fp["head_b"])
    return logits.T                                                # (N, num_classes)


# -----------------------------------------------------------------------------
# Deterministic parameter initialization (shapes follow the PyTorch __init__,
# conv weights stored HWIO / IO instead of OIHW for convenience).
# -----------------------------------------------------------------------------
def kaiming_uniform(key, shape, fan_in):
    bound = (6.0 / fan_in) ** 0.5
    return jax.random.uniform(key, shape, jnp.float32, -bound, bound)


def init_bn(key, c):
    k1, k2, k3, k4 = jax.random.split(key, 4)
    return dict(
        gamma=jax.random.uniform(k1, (c,), jnp.float32, 0.5, 1.5),
        beta=jax.random.uniform(k2, (c,), jnp.float32, -0.5, 0.5),
        mean=jax.random.uniform(k3, (c,), jnp.float32, -0.5, 0.5),
        var=jax.random.uniform(k4, (c,), jnp.float32, 0.5, 1.5),
    )


def init_params(key, cfg):
    keys = iter(jax.random.split(key, 256))
    nk = lambda: next(keys)

    cin = cfg["in_channels"]
    c0 = cfg["init_block_channels"]
    params = {
        "init_block": dict(
            res_w=kaiming_uniform(nk(), (3, 3, cin, c0), 9 * cin),
            res_bn=init_bn(nk(), c0),
            trans_w=kaiming_uniform(nk(), (3, 3, cin, c0), 9 * cin),
            trans_bn=init_bn(nk(), c0),
        )
    }
    in_c = c0
    stages = []
    for i, chans in enumerate(cfg["channels"]):
        stage = []
        for j, out_c in enumerate(chans):
            stride = 2 if (j == 0 and i != 0) else 1
            up = dict(
                res_pass_w=kaiming_uniform(nk(), (3, 3, in_c, out_c), 9 * in_c),
                trans_pass_w=kaiming_uniform(nk(), (3, 3, in_c, out_c), 9 * in_c),
                res_cross_w=kaiming_uniform(nk(), (3, 3, in_c, out_c), 9 * in_c),
                trans_cross_w=kaiming_uniform(nk(), (3, 3, in_c, out_c), 9 * in_c),
                res_bn=init_bn(nk(), out_c),
                trans_bn=init_bn(nk(), out_c),
            )
            if in_c != out_c or stride != 1:
                up["identity_w"] = kaiming_uniform(nk(), (in_c, out_c), in_c)
            stage.append(up)
            in_c = out_c
        stages.append(stage)
    params["stages"] = stages
    params["final_conv"] = dict(
        w=kaiming_uniform(nk(), (cfg["final_block_channels"], cfg["num_classes"]),
                          cfg["final_block_channels"]),
        bn=init_bn(nk(), cfg["num_classes"]),
    )
    return params


# -----------------------------------------------------------------------------
# Main
# -----------------------------------------------------------------------------
if __name__ == "__main__":
    # Small config consistent with the CIFARRiR constructor:
    #   in (2,4,16,16) -> init block (8ch/stream) -> stage1 [8,8] stride1
    #   -> stage2 [16,16] first unit stride2 (spatial 16->8)
    #   -> final cat => 32ch -> conv1x1_block -> 10 -> AvgPool2d(8) -> (2,10)
    CFG = dict(
        in_channels=4,
        init_block_channels=8,
        channels=[[8, 8], [16, 16]],
        final_block_channels=32,   # 2 * last-stage channels (res + trans concat)
        in_size=(16, 16),
        num_classes=10,
    )

    key = jax.random.PRNGKey(0)
    kx, kp = jax.random.split(key)
    x = jax.random.normal(kx, (2, CFG["in_channels"], *CFG["in_size"]), jnp.float32)
    params = init_params(kp, CFG)
    fused = prepare_fused_params(params)   # host-side BN/identity/stream folding, once

    fwd = jax.jit(cifar_rir_forward)
    out = jax.block_until_ready(fwd(x, fused))

    assert out.shape == (2, CFG["num_classes"]), out.shape
    assert bool(jnp.all(jnp.isfinite(out)))
    print("KERNEL_OK")
</pallas_src>

<mosaic_0001>
module attributes {stable_mosaic.version = 11 : i64} {
  func.func @_gemm_bias_relu_kernel(%arg0: i32, %arg1: memref<16x36xbf16, #tpu.memory_space<vmem>>, %arg2: memref<36x512xbf16, #tpu.memory_space<vmem>>, %arg3: memref<16x1xf32, #tpu.memory_space<vmem>>, %arg4: memref<16x512xbf16, #tpu.memory_space<vmem>>) attributes {dimension_semantics = [#tpu.dimension_semantics<parallel>], iteration_bounds = array<i64: 1>, scalar_prefetch = 0 : i64, scratch_operands = 0 : i64, tpu.core_type = #tpu.core_type<tc>, window_params = [{pipeline_mode = #tpu.pipeline_mode<synchronous>, transform_indices = @transform_0, window_bounds = array<i64: 16, 36>}, {transform_indices = @transform_1, window_bounds = array<i64: 36, 512>}, {pipeline_mode = #tpu.pipeline_mode<synchronous>, transform_indices = @transform_2, window_bounds = array<i64: 16, 1>}, {transform_indices = @transform_3, window_bounds = array<i64: 16, 512>}]} {
    %c0 = arith.constant 0 : index
    %c0_0 = arith.constant 0 : index
    %0 = vector.load %arg1[%c0, %c0_0] : memref<16x36xbf16, #tpu.memory_space<vmem>>, vector<16x36xbf16>
    %c0_1 = arith.constant 0 : index
    %c0_2 = arith.constant 0 : index
    %1 = vector.load %arg2[%c0_1, %c0_2] : memref<36x512xbf16, #tpu.memory_space<vmem>>, vector<36x512xbf16>
    %cst = arith.constant dense<0.000000e+00> : vector<16x512xf32>
    %2 = tpu.matmul %0, %1, %cst {dimension_numbers = #tpu.dot_dimension_numbers<[1], [0], [0], [1], [0, 0, 1, 1], [], []>} : vector<16x36xbf16>, vector<36x512xbf16>, vector<16x512xf32> -> vector<16x512xf32>
    %c0_3 = arith.constant 0 : index
    %c0_4 = arith.constant 0 : index
    %3 = vector.load %arg3[%c0_3, %c0_4] : memref<16x1xf32, #tpu.memory_space<vmem>>, vector<16x1xf32>
    %4 = vector.broadcast %3 : vector<16x1xf32> to vector<16x512xf32>
    %5 = arith.addf %2, %4 : vector<16x512xf32>
    %cst_5 = arith.constant 0.000000e+00 : f32
    %6 = vector.broadcast %cst_5 : f32 to vector<16x512xf32>
    %7 = arith.maximumf %5, %6 : vector<16x512xf32>
    %8 = arith.truncf %7 : vector<16x512xf32> to vector<16x512xbf16>
    %c0_6 = arith.constant 0 : index
    %c0_7 = arith.constant 0 : index
    %9 = vector.load %arg4[%c0_6, %c0_7] : memref<16x512xbf16, #tpu.memory_space<vmem>>, vector<16x512xbf16>
    tpu.vector_store %arg4[%c0_6, %c0_7], %8 {strides = array<i32>} : memref<16x512xbf16, #tpu.memory_space<vmem>>, vector<16x512xbf16>,
    return
  }
  func.func @transform_0(%arg0: i32) -> (i32, i32) {
    %c0_i32 = arith.constant 0 : i32
    %c0_i32_0 = arith.constant 0 : i32
    %c0_i32_1 = arith.constant 0 : i32
    return %c0_i32, %c0_i32_0 : i32, i32
  }
  func.func @transform_1(%arg0: i32) -> (i32, i32) {
    %c0_i32 = arith.constant 0 : i32
    %c0_i32_0 = arith.constant 0 : i32
    return %c0_i32, %arg0 : i32, i32
  }
  func.func @transform_2(%arg0: i32) -> (i32, i32) {
    %c0_i32 = arith.constant 0 : i32
    %c0_i32_0 = arith.constant 0 : i32
    %c0_i32_1 = arith.constant 0 : i32
    return %c0_i32, %c0_i32_0 : i32, i32
  }
  func.func @transform_3(%arg0: i32) -> (i32, i32) {
    %c0_i32 = arith.constant 0 : i32
    %c0_i32_0 = arith.constant 0 : i32
    return %c0_i32, %arg0 : i32, i32
  }
}

module attributes {stable_mosaic.version = 11 : i64} {
  func.func @_gemm_bias_relu_kernel(%arg0: i32, %arg1: memref<16x144xbf16, #tpu.memory_space<vmem>>, %arg2: memref<144x512xbf16, #tpu.memory_space<vmem>>, %arg3: memref<16x1xf32, #tpu.memory_space<vmem>>, %arg4: memref<16x512xbf16, #tpu.memory_space<vmem>>) attributes {dimension_semantics = [#tpu.dimension_semantics<parallel>], iteration_bounds = array<i64: 1>, scalar_prefetch = 0 : i64, scratch_operands = 0 : i64, tpu.core_type = #tpu.core_type<tc>, window_params = [{pipeline_mode = #tpu.pipeline_mode<synchronous>, transform_indices = @transform_0, window_bounds = array<i64: 16, 144>}, {transform_indices = @transform_1, window_bounds = array<i64: 144, 512>}, {pipeline_mode = #tpu.pipeline_mode<synchronous>, transform_indices = @transform_2, window_bounds = array<i64: 16, 1>}, {transform_indices = @transform_3, window_bounds = array<i64: 16, 512>}]} {
    %c0 = arith.constant 0 : index
    %c0_0 = arith.constant 0 : index
    %0 = vector.load %arg1[%c0, %c0_0] : memref<16x144xbf16, #tpu.memory_space<vmem>>, vector<16x144xbf16>
    %c0_1 = arith.constant 0 : index
    %c0_2 = arith.constant 0 : index
    %1 = vector.load %arg2[%c0_1, %c0_2] : memref<144x512xbf16, #tpu.memory_space<vmem>>, vector<144x512xbf16>
    %cst = arith.constant dense<0.000000e+00> : vector<16x512xf32>
    %2 = tpu.matmul %0, %1, %cst {dimension_numbers = #tpu.dot_dimension_numbers<[1], [0], [0], [1], [0, 0, 1, 1], [], []>} : vector<16x144xbf16>, vector<144x512xbf16>, vector<16x512xf32> -> vector<16x512xf32>
    %c0_3 = arith.constant 0 : index
    %c0_4 = arith.constant 0 : index
    %3 = vector.load %arg3[%c0_3, %c0_4] : memref<16x1xf32, #tpu.memory_space<vmem>>, vector<16x1xf32>
    %4 = vector.broadcast %3 : vector<16x1xf32> to vector<16x512xf32>
    %5 = arith.addf %2, %4 : vector<16x512xf32>
    %cst_5 = arith.constant 0.000000e+00 : f32
    %6 = vector.broadcast %cst_5 : f32 to vector<16x512xf32>
    %7 = arith.maximumf %5, %6 : vector<16x512xf32>
    %8 = arith.truncf %7 : vector<16x512xf32> to vector<16x512xbf16>
    %c0_6 = arith.constant 0 : index
    %c0_7 = arith.constant 0 : index
    %9 = vector.load %arg4[%c0_6, %c0_7] : memref<16x512xbf16, #tpu.memory_space<vmem>>, vector<16x512xbf16>
    tpu.vector_store %arg4[%c0_6, %c0_7], %8 {strides = array<i32>} : memref<16x512xbf16, #tpu.memory_space<vmem>>, vector<16x512xbf16>,
    return
  }
  func.func @transform_0(%arg0: i32) -> (i32, i32) {
    %c0_i32 = arith.constant 0 : i32
    %c0_i32_0 = arith.constant 0 : i32
    %c0_i32_1 = arith.constant 0 : i32
    return %c0_i32, %c0_i32_0 : i32, i32
  }
  func.func @transform_1(%arg0: i32) -> (i32, i32) {
    %c0_i32 = arith.constant 0 : i32
    %c0_i32_0 = arith.constant 0 : i32
    return %c0_i32, %arg0 : i32, i32
  }
  func.func @transform_2(%arg0: i32) -> (i32, i32) {
    %c0_i32 = arith.constant 0 : i32
    %c0_i32_0 = arith.constant 0 : i32
    %c0_i32_1 = arith.constant 0 : i32
    return %c0_i32, %c0_i32_0 : i32, i32
  }
  func.func @transform_3(%arg0: i32) -> (i32, i32) {
    %c0_i32 = arith.constant 0 : i32
    %c0_i32_0 = arith.constant 0 : i32
    return %c0_i32, %arg0 : i32, i32
  }
}

module attributes {stable_mosaic.version = 11 : i64} {
  func.func @_gemm_bias_relu_kernel(%arg0: i32, %arg1: memref<32x144xbf16, #tpu.memory_space<vmem>>, %arg2: memref<144x128xbf16, #tpu.memory_space<vmem>>, %arg3: memref<32x1xf32, #tpu.memory_space<vmem>>, %arg4: memref<32x128xbf16, #tpu.memory_space<vmem>>) attributes {dimension_semantics = [#tpu.dimension_semantics<parallel>], iteration_bounds = array<i64: 1>, scalar_prefetch = 0 : i64, scratch_operands = 0 : i64, tpu.core_type = #tpu.core_type<tc>, window_params = [{pipeline_mode = #tpu.pipeline_mode<synchronous>, transform_indices = @transform_0, window_bounds = array<i64: 32, 144>}, {transform_indices = @transform_1, window_bounds = array<i64: 144, 128>}, {pipeline_mode = #tpu.pipeline_mode<synchronous>, transform_indices = @transform_2, window_bounds = array<i64: 32, 1>}, {transform_indices = @transform_3, window_bounds = array<i64: 32, 128>}]} {
    %c0 = arith.constant 0 : index
    %c0_0 = arith.constant 0 : index
    %0 = vector.load %arg1[%c0, %c0_0] : memref<32x144xbf16, #tpu.memory_space<vmem>>, vector<32x144xbf16>
    %c0_1 = arith.constant 0 : index
    %c0_2 = arith.constant 0 : index
    %1 = vector.load %arg2[%c0_1, %c0_2] : memref<144x128xbf16, #tpu.memory_space<vmem>>, vector<144x128xbf16>
    %cst = arith.constant dense<0.000000e+00> : vector<32x128xf32>
    %2 = tpu.matmul %0, %1, %cst {dimension_numbers = #tpu.dot_dimension_numbers<[1], [0], [0], [1], [0, 0, 1, 1], [], []>} : vector<32x144xbf16>, vector<144x128xbf16>, vector<32x128xf32> -> vector<32x128xf32>
    %c0_3 = arith.constant 0 : index
    %c0_4 = arith.constant 0 : index
    %3 = vector.load %arg3[%c0_3, %c0_4] : memref<32x1xf32, #tpu.memory_space<vmem>>, vector<32x1xf32>
    %4 = vector.broadcast %3 : vector<32x1xf32> to vector<32x128xf32>
    %5 = arith.addf %2, %4 : vector<32x128xf32>
    %cst_5 = arith.constant 0.000000e+00 : f32
    %6 = vector.broadcast %cst_5 : f32 to vector<32x128xf32>
    %7 = arith.maximumf %5, %6 : vector<32x128xf32>
    %8 = arith.truncf %7 : vector<32x128xf32> to vector<32x128xbf16>
    %c0_6 = arith.constant 0 : index
    %c0_7 = arith.constant 0 : index
    %9 = vector.load %arg4[%c0_6, %c0_7] : memref<32x128xbf16, #tpu.memory_space<vmem>>, vector<32x128xbf16>
    tpu.vector_store %arg4[%c0_6, %c0_7], %8 {strides = array<i32>} : memref<32x128xbf16, #tpu.memory_space<vmem>>, vector<32x128xbf16>,
    return
  }
  func.func @transform_0(%arg0: i32) -> (i32, i32) {
    %c0_i32 = arith.constant 0 : i32
    %c0_i32_0 = arith.constant 0 : i32
    %c0_i32_1 = arith.constant 0 : i32
    return %c0_i32, %c0_i32_0 : i32, i32
  }
  func.func @transform_1(%arg0: i32) -> (i32, i32) {
    %c0_i32 = arith.constant 0 : i32
    %c0_i32_0 = arith.constant 0 : i32
    return %c0_i32, %arg0 : i32, i32
  }
  func.func @transform_2(%arg0: i32) -> (i32, i32) {
    %c0_i32 = arith.constant 0 : i32
    %c0_i32_0 = arith.constant 0 : i32
    %c0_i32_1 = arith.constant 0 : i32
    return %c0_i32, %c0_i32_0 : i32, i32
  }
  func.func @transform_3(%arg0: i32) -> (i32, i32) {
    %c0_i32 = arith.constant 0 : i32
    %c0_i32_0 = arith.constant 0 : i32
    return %c0_i32, %arg0 : i32, i32
  }
}

module attributes {stable_mosaic.version = 11 : i64} {
  func.func @_gemm_bias_relu_kernel(%arg0: i32, %arg1: memref<32x288xbf16, #tpu.memory_space<vmem>>, %arg2: memref<288x128xbf16, #tpu.memory_space<vmem>>, %arg3: memref<32x1xf32, #tpu.memory_space<vmem>>, %arg4: memref<32x128xbf16, #tpu.memory_space<vmem>>) attributes {dimension_semantics = [#tpu.dimension_semantics<parallel>], iteration_bounds = array<i64: 1>, scalar_prefetch = 0 : i64, scratch_operands = 0 : i64, tpu.core_type = #tpu.core_type<tc>, window_params = [{pipeline_mode = #tpu.pipeline_mode<synchronous>, transform_indices = @transform_0, window_bounds = array<i64: 32, 288>}, {transform_indices = @transform_1, window_bounds = array<i64: 288, 128>}, {pipeline_mode = #tpu.pipeline_mode<synchronous>, transform_indices = @transform_2, window_bounds = array<i64: 32, 1>}, {transform_indices = @transform_3, window_bounds = array<i64: 32, 128>}]} {
    %c0 = arith.constant 0 : index
    %c0_0 = arith.constant 0 : index
    %0 = vector.load %arg1[%c0, %c0_0] : memref<32x288xbf16, #tpu.memory_space<vmem>>, vector<32x288xbf16>
    %c0_1 = arith.constant 0 : index
    %c0_2 = arith.constant 0 : index
    %1 = vector.load %arg2[%c0_1, %c0_2] : memref<288x128xbf16, #tpu.memory_space<vmem>>, vector<288x128xbf16>
    %cst = arith.constant dense<0.000000e+00> : vector<32x128xf32>
    %2 = tpu.matmul %0, %1, %cst {dimension_numbers = #tpu.dot_dimension_numbers<[1], [0], [0], [1], [0, 0, 1, 1], [], []>} : vector<32x288xbf16>, vector<288x128xbf16>, vector<32x128xf32> -> vector<32x128xf32>
    %c0_3 = arith.constant 0 : index
    %c0_4 = arith.constant 0 : index
    %3 = vector.load %arg3[%c0_3, %c0_4] : memref<32x1xf32, #tpu.memory_space<vmem>>, vector<32x1xf32>
    %4 = vector.broadcast %3 : vector<32x1xf32> to vector<32x128xf32>
    %5 = arith.addf %2, %4 : vector<32x128xf32>
    %cst_5 = arith.constant 0.000000e+00 : f32
    %6 = vector.broadcast %cst_5 : f32 to vector<32x128xf32>
    %7 = arith.maximumf %5, %6 : vector<32x128xf32>
    %8 = arith.truncf %7 : vector<32x128xf32> to vector<32x128xbf16>
    %c0_6 = arith.constant 0 : index
    %c0_7 = arith.constant 0 : index
    %9 = vector.load %arg4[%c0_6, %c0_7] : memref<32x128xbf16, #tpu.memory_space<vmem>>, vector<32x128xbf16>
    tpu.vector_store %arg4[%c0_6, %c0_7], %8 {strides = array<i32>} : memref<32x128xbf16, #tpu.memory_space<vmem>>, vector<32x128xbf16>,
    return
  }
  func.func @transform_0(%arg0: i32) -> (i32, i32) {
    %c0_i32 = arith.constant 0 : i32
    %c0_i32_0 = arith.constant 0 : i32
    %c0_i32_1 = arith.constant 0 : i32
    return %c0_i32, %c0_i32_0 : i32, i32
  }
  func.func @transform_1(%arg0: i32) -> (i32, i32) {
    %c0_i32 = arith.constant 0 : i32
    %c0_i32_0 = arith.constant 0 : i32
    return %c0_i32, %arg0 : i32, i32
  }
  func.func @transform_2(%arg0: i32) -> (i32, i32) {
    %c0_i32 = arith.constant 0 : i32
    %c0_i32_0 = arith.constant 0 : i32
    %c0_i32_1 = arith.constant 0 : i32
    return %c0_i32, %c0_i32_0 : i32, i32
  }
  func.func @transform_3(%arg0: i32) -> (i32, i32) {
    %c0_i32 = arith.constant 0 : i32
    %c0_i32_0 = arith.constant 0 : i32
    return %c0_i32, %arg0 : i32, i32
  }
}

module attributes {stable_mosaic.version = 11 : i64} {
  func.func @_pool_head_kernel(%arg0: i32, %arg1: memref<32x2x64xbf16, #tpu.memory_space<vmem>>, %arg2: memref<10x32xf32, #tpu.memory_space<vmem>>, %arg3: memref<10x1xf32, #tpu.memory_space<vmem>>, %arg4: memref<10x2xf32, #tpu.memory_space<vmem>>) attributes {dimension_semantics = [#tpu.dimension_semantics<arbitrary>], iteration_bounds = array<i64: 1>, scalar_prefetch = 0 : i64, scratch_operands = 0 : i64, tpu.core_type = #tpu.core_type<tc>, window_params = [{pipeline_mode = #tpu.pipeline_mode<synchronous>, transform_indices = @transform_0, window_bounds = array<i64: 32, 2, 64>}, {pipeline_mode = #tpu.pipeline_mode<synchronous>, transform_indices = @transform_1, window_bounds = array<i64: 10, 32>}, {pipeline_mode = #tpu.pipeline_mode<synchronous>, transform_indices = @transform_2, window_bounds = array<i64: 10, 1>}, {pipeline_mode = #tpu.pipeline_mode<synchronous>, transform_indices = @transform_3, window_bounds = array<i64: 10, 2>}]} {
    %c0 = arith.constant 0 : index
    %c0_0 = arith.constant 0 : index
    %c0_1 = arith.constant 0 : index
    %0 = vector.load %arg1[%c0, %c0_0, %c0_1] : memref<32x2x64xbf16, #tpu.memory_space<vmem>>, vector<32x2x64xbf16>
    %1 = arith.extf %0 : vector<32x2x64xbf16> to vector<32x2x64xf32>
    %cst = arith.constant dense<0.000000e+00> : vector<32x2xf32>
    %2 = vector.multi_reduction <add>, %1, %cst [2] : vector<32x2x64xf32> to vector<32x2xf32>
    %cst_2 = arith.constant 6.400000e+01 : f32
    %3 = vector.broadcast %cst_2 : f32 to vector<32x2xf32>
    %4 = arith.divf %2, %3 : vector<32x2xf32>
    %c0_3 = arith.constant 0 : index
    %c0_4 = arith.constant 0 : index
    %5 = vector.load %arg2[%c0_3, %c0_4] : memref<10x32xf32, #tpu.memory_space<vmem>>, vector<10x32xf32>
    %cst_5 = arith.constant dense<0.000000e+00> : vector<10x2xf32>
    %6 = tpu.matmul %5, %4, %cst_5 {dimension_numbers = #tpu.dot_dimension_numbers<[1], [0], [0], [1], [0, 0, 1, 1], [], []>} : vector<10x32xf32>, vector<32x2xf32>, vector<10x2xf32> -> vector<10x2xf32>
    %c0_6 = arith.constant 0 : index
    %c0_7 = arith.constant 0 : index
    %7 = vector.load %arg3[%c0_6, %c0_7] : memref<10x1xf32, #tpu.memory_space<vmem>>, vector<10x1xf32>
    %8 = vector.broadcast %7 : vector<10x1xf32> to vector<10x2xf32>
    %9 = arith.addf %6, %8 : vector<10x2xf32>
    %c0_8 = arith.constant 0 : index
    %c0_9 = arith.constant 0 : index
    %10 = vector.load %arg4[%c0_8, %c0_9] : memref<10x2xf32, #tpu.memory_space<vmem>>, vector<10x2xf32>
    tpu.vector_store %arg4[%c0_8, %c0_9], %9 {strides = array<i32>} : memref<10x2xf32, #tpu.memory_space<vmem>>, vector<10x2xf32>,
    return
  }
  func.func @transform_0(%arg0: i32) -> (i32, i32, i32) {
    %c0_i32 = arith.constant 0 : i32
    %c0_i32_0 = arith.constant 0 : i32
    %c0_i32_1 = arith.constant 0 : i32
    %c0_i32_2 = arith.constant 0 : i32
    return %c0_i32, %c0_i32_0, %c0_i32_1 : i32, i32, i32
  }
  func.func @transform_1(%arg0: i32) -> (i32, i32) {
    %c0_i32 = arith.constant 0 : i32
    %c0_i32_0 = arith.constant 0 : i32
    %c0_i32_1 = arith.constant 0 : i32
    return %c0_i32, %c0_i32_0 : i32, i32
  }
  func.func @transform_2(%arg0: i32) -> (i32, i32) {
    %c0_i32 = arith.constant 0 : i32
    %c0_i32_0 = arith.constant 0 : i32
    %c0_i32_1 = arith.constant 0 : i32
    return %c0_i32, %c0_i32_0 : i32, i32
  }
  func.func @transform_3(%arg0: i32) -> (i32, i32) {
    %c0_i32 = arith.constant 0 : i32
    %c0_i32_0 = arith.constant 0 : i32
    %c0_i32_1 = arith.constant 0 : i32
    return %c0_i32, %c0_i32_0 : i32, i32
  }
}

</mosaic_0001>

<llo_original>
// kernel: cifar_rir_forward.6
$region0: #{cifar_rir_forward.6}
  #allocation0 [shape = 'u32[]', space=smem, size = 0x4, offset = 0x4, fixed_abs, tag = 'smem constant byte address 0x4 - core index']
  #allocation1 [shape = 'u32[144,128]{1,0:T(1,128)}', space=vmem, size = 0x12000, scoped, tag = 'internal scratch']
  %s0 = inlined_call_operand.vmem [shape: bf16[16,36], index: 0, kind: input, shape index: {}]
  %s1 = inlined_call_operand.vmem [shape: bf16[36,512], index: 1, kind: input, shape index: {}]
  %s2 = inlined_call_operand.vmem [shape: f32[16,1], index: 2, kind: input, shape index: {}]
  %s3 = inlined_call_operand.vmem [shape: bf16[16,512], index: 3, kind: output, shape index: {}]
  %s4 = sld [smem:[#allocation0]]
  $region22: #{cifar_rir_forward.6} parent=0
    _
  %s6 = ssub.s32 1, %s4
  %s7 = scalar_select 0, %s6, %s4
  // Predicated region
  $region2: #{cifar_rir_forward.6} parent=0 // pred_check
    _
  $region3: #{cifar_rir_forward.6} parent=0 // pred_check_branch
    %9 = sbr.rel (0) target = $region5
  $region4: #{cifar_rir_forward.6} parent=0 // pred_region
    _
  $region5: #{cifar_rir_forward.6} parent=0 // pred_fallthru
    _
  // Predicated region
  $region6: #{cifar_rir_forward.6} parent=0 // pred_check
    _
  $region7: #{cifar_rir_forward.6} parent=0 // pred_check_branch
    %11 = sbr.rel (0) target = $region9
  $region8: #{cifar_rir_forward.6} parent=0 // pred_region
    _
  $region9: #{cifar_rir_forward.6} parent=0 // pred_fallthru
    _
  // Predicated region
  $region10: #{cifar_rir_forward.6} parent=0 // pred_check
    _
  $region11: #{cifar_rir_forward.6} parent=0 // pred_check_branch
    %13 = sbr.rel (0) target = $region13
  $region12: #{cifar_rir_forward.6} parent=0 // pred_region
    _
  $region13: #{cifar_rir_forward.6} parent=0 // pred_fallthru
    _
  %v15 = vld [vmem:[%s0] sm:$0xf]
  %v16 = vld [vmem:[%s0 + $0x4] sm:$0xf]
  %v17 = vld [vmem:[%s1] sm:$0xff]
  %v18 = vld [vmem:[%s1 + $0x8] sm:$0xff]
  %v19 = vld [vmem:[%s1 + $0x10] sm:$0xff]
  %v20 = vld [vmem:[%s1 + $0x18] sm:$0xff]
  %v21 = vld [vmem:[%s1 + $0x20] sm:$0xff]
  %v22 = vld [vmem:[%s1 + $0x28] sm:$0xff]
  %v23 = vld [vmem:[%s1 + $0x30] sm:$0xff]
  %v24 = vld [vmem:[%s1 + $0x38] sm:$0xff]
  %v25 = vld [vmem:[%s1 + $0x40] sm:$0x33]
  %v26 = vld [vmem:[%s1 + $0x48] sm:$0x33]
  %v27 = vld [vmem:[%s2] sm:$0xff]
  %v28 = vld [vmem:[%s2 + $0x8] sm:$0xff]
  %30 = vset.pattern.permute.xlu0 0
  %31 = vperm.xlu0 %30, %v27
  %v32 = vpop.permute.xlu0 %31
  %35 = vset.pattern.permute.xlu0 0
  %36 = vperm.xlu0 %35, %v28
  %v37 = vpop.permute.xlu0 %36
  %v41 = vunpack.c.l.b16 %v15
  %v42 = vunpack.c.l.b16 %v16
  %v43 = vpack.c.b16 %v42, %v41
  %v54 = vunpack.c.l.b16 %v17
  %v55 = vunpack.c.h.b16 %v17
  %v56 = vunpack.c.l.b16 %v18
  %v57 = vunpack.c.h.b16 %v18
  %v58 = vunpack.c.l.b16 %v19
  %v59 = vunpack.c.h.b16 %v19
  %v60 = vunpack.c.l.b16 %v20
  %v61 = vunpack.c.h.b16 %v20
  %v62 = vunpack.c.l.b16 %v21
  %v63 = vunpack.c.h.b16 %v21
  %v64 = vunpack.c.l.b16 %v22
  %v65 = vunpack.c.h.b16 %v22
  %v66 = vunpack.c.l.b16 %v23
  %v67 = vunpack.c.h.b16 %v23
  %v68 = vunpack.c.l.b16 %v24
  %v69 = vunpack.c.h.b16 %v24
  %v70 = vunpack.c.l.b16 %v25
  %v71 = vunpack.c.h.b16 %v25
  %v72 = vunpack.c.l.b16 %v26
  %v73 = vunpack.c.h.b16 %v26
  %v74 = vpack.c.b16 %v58, %v54
  %v75 = vpack.c.b16 %v59, %v55
  %v76 = vpack.c.b16 %v60, %v56
  %v77 = vpack.c.b16 %v61, %v57
  %v78 = vpack.c.b16 %v66, %v62
  %v79 = vpack.c.b16 %v67, %v63
  %v80 = vpack.c.b16 %v68, %v64
  %v81 = vpack.c.b16 %v69, %v65
  %v82 = vpack.c.b16 %v70, %v70
  %v83 = vpack.c.b16 %v71, %v71
  %v84 = vpack.c.b16 %v72, %v72
  %v85 = vpack.c.b16 %v73, %v73
  %vm94 = vcmask 293888
  %v96 = vsel %vm94, %v43, 0
  %vm98 = vcmask 1041408
  %v100 = vsel %vm98, %v82, 0
  %v103 = vsel %vm98, %v83, 0
  %v106 = vsel %vm98, %v84, 0
  %v109 = vsel %vm98, %v85, 0
  %111 = vmatprep.subr.bf16.mxu0 %v75
  %112 = vmatpush1.bf16.msra.mxu0 %v74
  %113 = vmatprep.subr.bf16.mxu0 %v79
  %114 = vmatpush1.bf16.msra.mxu0 %v78
  %115 = vmatprep.subr.bf16.mxu0 %v103
  %116 = vmatpush1.bf16.msra.mxu0 %v100
  %117 = vmatprep.subr.bf16.mxu0 0
  %118 = vmatpush1.bf16.msra.mxu0 0
  %119 = vmatprep.subr.bf16.mxu0 0
  %120 = vmatpush1.bf16.msra.mxu0 0
  %121 = vmatprep.subr.bf16.mxu0 0
  %122 = vmatpush1.bf16.msra.mxu0 0
  %123 = vmatprep.subr.bf16.mxu0 0
  %124 = vmatpush1.bf16.msra.mxu0 0
  %125 = vmatprep.subr.bf16.mxu0 0
  %126 = vmatpush1.bf16.msra.mxu0 0
  %127 = vmatprep.subr.bf16.mxu0 0
  %128 = vmatpush1.bf16.msra.mxu0 0
  %129 = vmatprep.subr.bf16.mxu0 0
  %130 = vmatpush1.bf16.msra.mxu0 0
  %131 = vmatprep.subr.bf16.mxu0 0
  %132 = vmatpush1.bf16.msra.mxu0 0
  %133 = vmatprep.subr.bf16.mxu0 0
  %134 = vmatpush1.bf16.msra.mxu0 0
  %135 = vmatprep.subr.bf16.mxu0 0
  %136 = vmatpush1.bf16.msra.mxu0 0
  %137 = vmatprep.subr.bf16.mxu0 0
  %138 = vmatpush1.bf16.msra.mxu0 0
  %139 = vmatprep.subr.bf16.mxu0 0
  %140 = vmatpush1.bf16.msra.mxu0 0
  %141 = vmatprep.subr.bf16.mxu0 0
  %142 = vmatpush1.bf16.msra.mxu0 0
  %143 = vmatprep.mubr.bf16.mxu0 0
  %144 = vmatmul.mubr.bf16.gmra.mrb[0].mxu0 %v96
  %v145 = vpop.f32.mrb[0].mxu0
  %v146 = vadd.f32 %v32, %v145
  %v147 = vpop.f32.mrb[0].mxu0
  %v148 = vadd.f32 %v32, %v147
  %v149 = vpop.f32.mrb[0].mxu0
  %v150 = vadd.f32 %v37, %v149
  %v151 = vpop.f32.mrb[0].mxu0
  %v152 = vadd.f32 %v37, %v151
  %153 = vdwg.mxu0
  %154 = vmatprep.subr.bf16.mxu0 %v77
  %155 = vmatpush1.bf16.msra.mxu0 %v76
  %156 = vmatprep.subr.bf16.mxu0 %v81
  %157 = vmatpush1.bf16.msra.mxu0 %v80
  %158 = vmatprep.subr.bf16.mxu0 %v109
  %159 = vmatpush1.bf16.msra.mxu0 %v106
  %160 = vmatprep.subr.bf16.mxu0 0
  %161 = vmatpush1.bf16.msra.mxu0 0
  %162 = vmatprep.subr.bf16.mxu0 0
  %163 = vmatpush1.bf16.msra.mxu0 0
  %164 = vmatprep.subr.bf16.mxu0 0
  %165 = vmatpush1.bf16.msra.mxu0 0
  %166 = vmatprep.subr.bf16.mxu0 0
  %167 = vmatpush1.bf16.msra.mxu0 0
  %168 = vmatprep.subr.bf16.mxu0 0
  %169 = vmatpush1.bf16.msra.mxu0 0
  %170 = vmatprep.subr.bf16.mxu0 0
  %171 = vmatpush1.bf16.msra.mxu0 0
  %172 = vmatprep.subr.bf16.mxu0 0
  %173 = vmatpush1.bf16.msra.mxu0 0
  %174 = vmatprep.subr.bf16.mxu0 0
  %175 = vmatpush1.bf16.msra.mxu0 0
  %176 = vmatprep.subr.bf16.mxu0 0
  %177 = vmatpush1.bf16.msra.mxu0 0
  %178 = vmatprep.subr.bf16.mxu0 0
  %179 = vmatpush1.bf16.msra.mxu0 0
  %180 = vmatprep.subr.bf16.mxu0 0
  %181 = vmatpush1.bf16.msra.mxu0 0
  %182 = vmatprep.subr.bf16.mxu0 0
  %183 = vmatpush1.bf16.msra.mxu0 0
  %184 = vmatprep.subr.bf16.mxu0 0
  %185 = vmatpush1.bf16.msra.mxu0 0
  %186 = vmatprep.mubr.bf16.mxu0 0
  %187 = vmatmul.mubr.bf16.gmra.mrb[0].mxu0 %v96
  %v188 = vpop.f32.mrb[0].mxu0
  %v189 = vadd.f32 %v32, %v188
  %v190 = vpop.f32.mrb[0].mxu0
  %v191 = vadd.f32 %v32, %v190
  %v192 = vpop.f32.mrb[0].mxu0
  %v193 = vadd.f32 %v37, %v192
  %v194 = vpop.f32.mrb[0].mxu0
  %v195 = vadd.f32 %v37, %v194
  %196 = vdwg.mxu0
  %v197 = vmax.f32 %v146, 0.0
  %v198 = vmax.f32 %v148, 0.0
  %v199 = vmax.f32 %v189, 0.0
  %v200 = vmax.f32 %v191, 0.0
  %v201 = vmax.f32 %v150, 0.0
  %v202 = vmax.f32 %v152, 0.0
  %v203 = vmax.f32 %v193, 0.0
  %v204 = vmax.f32 %v195, 0.0
  %v205 = vpack.c.bf16 %v201, %v197
  %v206 = vpack.c.bf16 %v202, %v198
  %v207 = vpack.c.bf16 %v203, %v199
  %v208 = vpack.c.bf16 %v204, %v200
  %v213 = vunpack.c.l.b16 %v205
  %v214 = vunpack.c.l.b16 %v206
  %v215 = vunpack.c.l.b16 %v207
  %v216 = vunpack.c.l.b16 %v208
  %v217 = vunpack.c.h.b16 %v205
  %v218 = vunpack.c.h.b16 %v206
  %v219 = vunpack.c.h.b16 %v207
  %v220 = vunpack.c.h.b16 %v208
  %v221 = vpack.c.b16 %v214, %v213
  %v222 = vpack.c.b16 %v216, %v215
  %v223 = vpack.c.b16 %v218, %v217
  %v224 = vpack.c.b16 %v220, %v219
  %229 = vst [vmem:[%s3] sm:$0xff] %v221
  %230 = vst [vmem:[%s3 + $0x8] sm:$0xff] %v222
  %231 = vst [vmem:[%s3 + $0x10] sm:$0xff] %v223
  %232 = vst [vmem:[%s3 + $0x18] sm:$0xff] %v224
  // Predicated region
  $region14: #{cifar_rir_forward.6} parent=0 // pred_check
    _
  $region15: #{cifar_rir_forward.6} parent=0 // pred_check_branch
    %234 = sbr.rel (0) target = $region17
  $region16: #{cifar_rir_forward.6} parent=0 // pred_region
    _
  $region17: #{cifar_rir_forward.6} parent=0 // pred_fallthru
    _
  // Predicated region
  $region18: #{cifar_rir_forward.6} parent=0 // pred_check
    _
  $region19: #{cifar_rir_forward.6} parent=0 // pred_check_branch
    %236 = sbr.rel (0) target = $region21
  $region20: #{cifar_rir_forward.6} parent=0 // pred_region
    _
  $region21: #{cifar_rir_forward.6} parent=0 // pred_fallthru
    _

// kernel: cifar_rir_forward.7
$region0: #{cifar_rir_forward.7}
  #allocation0 [shape = 'u32[]', space=smem, size = 0x4, offset = 0x4, fixed_abs, tag = 'smem constant byte address 0x4 - core index']
  #allocation1 [shape = 'u32[144,128]{1,0:T(1,128)}', space=vmem, size = 0x12000, scoped, tag = 'internal scratch']
  %s0 = inlined_call_operand.vmem [shape: bf16[16,144], index: 0, kind: input, shape index: {}]
  %s1 = inlined_call_operand.vmem [shape: bf16[144,512], index: 1, kind: input, shape index: {}]
  %s2 = inlined_call_operand.vmem [shape: f32[16,1], index: 2, kind: input, shape index: {}]
  %s3 = inlined_call_operand.vmem [shape: bf16[16,512], index: 3, kind: output, shape index: {}]
  %s4 = sld [smem:[#allocation0]]
  $region22: #{cifar_rir_forward.7} parent=0
    _
  %s6 = ssub.s32 1, %s4
  %s7 = scalar_select 0, %s6, %s4
  // Predicated region
  $region2: #{cifar_rir_forward.7} parent=0 // pred_check
    _
  $region3: #{cifar_rir_forward.7} parent=0 // pred_check_branch
    %9 = sbr.rel (0) target = $region5
  $region4: #{cifar_rir_forward.7} parent=0 // pred_region
    _
  $region5: #{cifar_rir_forward.7} parent=0 // pred_fallthru
    _
  // Predicated region
  $region6: #{cifar_rir_forward.7} parent=0 // pred_check
    _
  $region7: #{cifar_rir_forward.7} parent=0 // pred_check_branch
    %11 = sbr.rel (0) target = $region9
  $region8: #{cifar_rir_forward.7} parent=0 // pred_region
    _
  $region9: #{cifar_rir_forward.7} parent=0 // pred_fallthru
    _
  // Predicated region
  $region10: #{cifar_rir_forward.7} parent=0 // pred_check
    _
  $region11: #{cifar_rir_forward.7} parent=0 // pred_check_branch
    %13 = sbr.rel (0) target = $region13
  $region12: #{cifar_rir_forward.7} parent=0 // pred_region
    _
  $region13: #{cifar_rir_forward.7} parent=0 // pred_fallthru
    _
  %v15 = vld [vmem:[%s0] sm:$0xff]
  %v16 = vld [vmem:[%s0 + $0x8] sm:$0xff]
  %v17 = vld [vmem:[%s1] sm:$0xff]
  %v18 = vld [vmem:[%s1 + $0x8] sm:$0xff]
  %v19 = vld [vmem:[%s1 + $0x10] sm:$0xff]
  %v20 = vld [vmem:[%s1 + $0x18] sm:$0xff]
  %v21 = vld [vmem:[%s1 + $0x20] sm:$0xff]
  %v22 = vld [vmem:[%s1 + $0x28] sm:$0xff]
  %v23 = vld [vmem:[%s1 + $0x30] sm:$0xff]
  %v24 = vld [vmem:[%s1 + $0x38] sm:$0xff]
  %v25 = vld [vmem:[%s1 + $0x40] sm:$0xff]
  %v26 = vld [vmem:[%s1 + $0x48] sm:$0xff]
  %v27 = vld [vmem:[%s1 + $0x50] sm:$0xff]
  %v28 = vld [vmem:[%s1 + $0x58] sm:$0xff]
  %v29 = vld [vmem:[%s1 + $0x60] sm:$0xff]
  %v30 = vld [vmem:[%s1 + $0x68] sm:$0xff]
  %v31 = vld [vmem:[%s1 + $0x70] sm:$0xff]
  %v32 = vld [vmem:[%s1 + $0x78] sm:$0xff]
  %v33 = vld [vmem:[%s1 + $0x80] sm:$0xff]
  %v34 = vld [vmem:[%s1 + $0x88] sm:$0xff]
  %v35 = vld [vmem:[%s1 + $0x90] sm:$0xff]
  %v36 = vld [vmem:[%s1 + $0x98] sm:$0xff]
  %v37 = vld [vmem:[%s1 + $0xa0] sm:$0xff]
  %v38 = vld [vmem:[%s1 + $0xa8] sm:$0xff]
  %v39 = vld [vmem:[%s1 + $0xb0] sm:$0xff]
  %v40 = vld [vmem:[%s1 + $0xb8] sm:$0xff]
  %v41 = vld [vmem:[%s1 + $0xc0] sm:$0xff]
  %v42 = vld [vmem:[%s1 + $0xc8] sm:$0xff]
  %v43 = vld [vmem:[%s1 + $0xd0] sm:$0xff]
  %v44 = vld [vmem:[%s1 + $0xd8] sm:$0xff]
  %v45 = vld [vmem:[%s1 + $0xe0] sm:$0xff]
  %v46 = vld [vmem:[%s1 + $0xe8] sm:$0xff]
  %v47 = vld [vmem:[%s1 + $0xf0] sm:$0xff]
  %v48 = vld [vmem:[%s1 + $0xf8] sm:$0xff]
  %v49 = vld [vmem:[%s1 + $0x100] sm:$0xff]
  %v50 = vld [vmem:[%s1 + $0x108] sm:$0xff]
  %v51 = vld [vmem:[%s1 + $0x110] sm:$0xff]
  %v52 = vld [vmem:[%s1 + $0x118] sm:$0xff]
  %v53 = vld [vmem:[%s2] sm:$0xff]
  %v54 = vld [vmem:[%s2 + $0x8] sm:$0xff]
  %56 = vset.pattern.permute.xlu0 0
  %57 = vperm.xlu0 %56, %v53
  %v58 = vpop.permute.xlu0 %57
  %61 = vset.pattern.permute.xlu0 0
  %62 = vperm.xlu0 %61, %v54
  %v63 = vpop.permute.xlu0 %62
  %v67 = vunpack.c.l.b16 %v15
  %v68 = vunpack.c.h.b16 %v15
  %v69 = vunpack.c.l.b16 %v16
  %v70 = vunpack.c.h.b16 %v16
  %v71 = vpack.c.b16 %v69, %v67
  %v72 = vpack.c.b16 %v70, %v68
  %v110 = vunpack.c.l.b16 %v17
  %v111 = vunpack.c.h.b16 %v17
  %v112 = vunpack.c.l.b16 %v18
  %v113 = vunpack.c.h.b16 %v18
  %v114 = vunpack.c.l.b16 %v19
  %v115 = vunpack.c.h.b16 %v19
  %v116 = vunpack.c.l.b16 %v20
  %v117 = vunpack.c.h.b16 %v20
  %v118 = vunpack.c.l.b16 %v21
  %v119 = vunpack.c.h.b16 %v21
  %v120 = vunpack.c.l.b16 %v22
  %v121 = vunpack.c.h.b16 %v22
  %v122 = vunpack.c.l.b16 %v23
  %v123 = vunpack.c.h.b16 %v23
  %v124 = vunpack.c.l.b16 %v24
  %v125 = vunpack.c.h.b16 %v24
  %v126 = vunpack.c.l.b16 %v25
  %v127 = vunpack.c.h.b16 %v25
  %v128 = vunpack.c.l.b16 %v26
  %v129 = vunpack.c.h.b16 %v26
  %v130 = vunpack.c.l.b16 %v27
  %v131 = vunpack.c.h.b16 %v27
  %v132 = vunpack.c.l.b16 %v28
  %v133 = vunpack.c.h.b16 %v28
  %v134 = vunpack.c.l.b16 %v29
  %v135 = vunpack.c.h.b16 %v29
  %v136 = vunpack.c.l.b16 %v30
  %v137 = vunpack.c.h.b16 %v30
  %v138 = vunpack.c.l.b16 %v31
  %v139 = vunpack.c.h.b16 %v31
  %v140 = vunpack.c.l.b16 %v32
  %v141 = vunpack.c.h.b16 %v32
  %v142 = vunpack.c.l.b16 %v33
  %v143 = vunpack.c.h.b16 %v33
  %v144 = vunpack.c.l.b16 %v34
  %v145 = vunpack.c.h.b16 %v34
  %v146 = vunpack.c.l.b16 %v35
  %v147 = vunpack.c.h.b16 %v35
  %v148 = vunpack.c.l.b16 %v36
  %v149 = vunpack.c.h.b16 %v36
  %v150 = vunpack.c.l.b16 %v37
  %v151 = vunpack.c.h.b16 %v37
  %v152 = vunpack.c.l.b16 %v38
  %v153 = vunpack.c.h.b16 %v38
  %v154 = vunpack.c.l.b16 %v39
  %v155 = vunpack.c.h.b16 %v39
  %v156 = vunpack.c.l.b16 %v40
  %v157 = vunpack.c.h.b16 %v40
  %v158 = vunpack.c.l.b16 %v41
  %v159 = vunpack.c.h.b16 %v41
  %v160 = vunpack.c.l.b16 %v42
  %v161 = vunpack.c.h.b16 %v42
  %v162 = vunpack.c.l.b16 %v43
  %v163 = vunpack.c.h.b16 %v43
  %v164 = vunpack.c.l.b16 %v44
  %v165 = vunpack.c.h.b16 %v44
  %v166 = vunpack.c.l.b16 %v45
  %v167 = vunpack.c.h.b16 %v45
  %v168 = vunpack.c.l.b16 %v46
  %v169 = vunpack.c.h.b16 %v46
  %v170 = vunpack.c.l.b16 %v47
  %v171 = vunpack.c.h.b16 %v47
  %v172 = vunpack.c.l.b16 %v48
  %v173 = vunpack.c.h.b16 %v48
  %v174 = vunpack.c.l.b16 %v49
  %v175 = vunpack.c.h.b16 %v49
  %v176 = vunpack.c.l.b16 %v50
  %v177 = vunpack.c.h.b16 %v50
  %v178 = vunpack.c.l.b16 %v51
  %v179 = vunpack.c.h.b16 %v51
  %v180 = vunpack.c.l.b16 %v52
  %v181 = vunpack.c.h.b16 %v52
  %v182 = vpack.c.b16 %v114, %v110
  %v183 = vpack.c.b16 %v115, %v111
  %v184 = vpack.c.b16 %v116, %v112
  %v185 = vpack.c.b16 %v117, %v113
  %v186 = vpack.c.b16 %v122, %v118
  %v187 = vpack.c.b16 %v123, %v119
  %v188 = vpack.c.b16 %v124, %v120
  %v189 = vpack.c.b16 %v125, %v121
  %v190 = vpack.c.b16 %v130, %v126
  %v191 = vpack.c.b16 %v131, %v127
  %v192 = vpack.c.b16 %v132, %v128
  %v193 = vpack.c.b16 %v133, %v129
  %v194 = vpack.c.b16 %v138, %v134
  %v195 = vpack.c.b16 %v139, %v135
  %v196 = vpack.c.b16 %v140, %v136
  %v197 = vpack.c.b16 %v141, %v137
  %v198 = vpack.c.b16 %v146, %v142
  %v199 = vpack.c.b16 %v147, %v143
  %v200 = vpack.c.b16 %v148, %v144
  %v201 = vpack.c.b16 %v149, %v145
  %v202 = vpack.c.b16 %v154, %v150
  %v203 = vpack.c.b16 %v155, %v151
  %v204 = vpack.c.b16 %v156, %v152
  %v205 = vpack.c.b16 %v157, %v153
  %v206 = vpack.c.b16 %v162, %v158
  %v207 = vpack.c.b16 %v163, %v159
  %v208 = vpack.c.b16 %v164, %v160
  %v209 = vpack.c.b16 %v165, %v161
  %v210 = vpack.c.b16 %v170, %v166
  %v211 = vpack.c.b16 %v171, %v167
  %v212 = vpack.c.b16 %v172, %v168
  %v213 = vpack.c.b16 %v173, %v169
  %v214 = vpack.c.b16 %v178, %v174
  %v215 = vpack.c.b16 %v179, %v175
  %v216 = vpack.c.b16 %v180, %v176
  %v217 = vpack.c.b16 %v181, %v177
  %vm254 = vcmask 130048
  %v256 = vsel %vm254, %v72, 0
  %258 = vmatprep.subr.bf16.mxu0 %v183
  %259 = vmatpush1.bf16.msra.mxu0 %v182
  %260 = vmatprep.subr.bf16.mxu0 %v187
  %261 = vmatpush1.bf16.msra.mxu0 %v186
  %262 = vmatprep.subr.bf16.mxu0 %v191
  %263 = vmatpush1.bf16.msra.mxu0 %v190
  %264 = vmatprep.subr.bf16.mxu0 %v195
  %265 = vmatpush1.bf16.msra.mxu0 %v194
  %266 = vmatprep.subr.bf16.mxu0 %v199
  %267 = vmatpush1.bf16.msra.mxu0 %v198
  %268 = vmatprep.subr.bf16.mxu0 %v203
  %269 = vmatpush1.bf16.msra.mxu0 %v202
  %270 = vmatprep.subr.bf16.mxu0 %v207
  %271 = vmatpush1.bf16.msra.mxu0 %v206
  %272 = vmatprep.subr.bf16.mxu0 %v211
  %273 = vmatpush1.bf16.msra.mxu0 %v210
  %274 = vmatprep.subr.bf16.mxu0 %v215
  %275 = vmatpush1.bf16.msra.mxu0 %v214
  %276 = vmatprep.subr.bf16.mxu0 0
  %277 = vmatpush1.bf16.msra.mxu0 0
  %278 = vmatprep.subr.bf16.mxu0 0
  %279 = vmatpush1.bf16.msra.mxu0 0
  %280 = vmatprep.subr.bf16.mxu0 0
  %281 = vmatpush1.bf16.msra.mxu0 0
  %282 = vmatprep.subr.bf16.mxu0 0
  %283 = vmatpush1.bf16.msra.mxu0 0
  %284 = vmatprep.subr.bf16.mxu0 0
  %285 = vmatpush1.bf16.msra.mxu0 0
  %286 = vmatprep.subr.bf16.mxu0 0
  %287 = vmatpush1.bf16.msra.mxu0 0
  %288 = vmatprep.subr.bf16.mxu0 0
  %289 = vmatpush1.bf16.msra.mxu0 0
  %290 = vmatprep.mubr.bf16.mxu0 %v256
  %291 = vmatmul.mubr.bf16.gmra.mrb[0].mxu0 %v71
  %v292 = vpop.f32.mrb[0].mxu0
  %v293 = vadd.f32 %v58, %v292
  %v294 = vpop.f32.mrb[0].mxu0
  %v295 = vadd.f32 %v58, %v294
  %v296 = vpop.f32.mrb[0].mxu0
  %v297 = vadd.f32 %v63, %v296
  %v298 = vpop.f32.mrb[0].mxu0
  %v299 = vadd.f32 %v63, %v298
  %300 = vdwg.mxu0
  %301 = vmatprep.subr.bf16.mxu0 %v185
  %302 = vmatpush1.bf16.msra.mxu0 %v184
  %303 = vmatprep.subr.bf16.mxu0 %v189
  %304 = vmatpush1.bf16.msra.mxu0 %v188
  %305 = vmatprep.subr.bf16.mxu0 %v193
  %306 = vmatpush1.bf16.msra.mxu0 %v192
  %307 = vmatprep.subr.bf16.mxu0 %v197
  %308 = vmatpush1.bf16.msra.mxu0 %v196
  %309 = vmatprep.subr.bf16.mxu0 %v201
  %310 = vmatpush1.bf16.msra.mxu0 %v200
  %311 = vmatprep.subr.bf16.mxu0 %v205
  %312 = vmatpush1.bf16.msra.mxu0 %v204
  %313 = vmatprep.subr.bf16.mxu0 %v209
  %314 = vmatpush1.bf16.msra.mxu0 %v208
  %315 = vmatprep.subr.bf16.mxu0 %v213
  %316 = vmatpush1.bf16.msra.mxu0 %v212
  %317 = vmatprep.subr.bf16.mxu0 %v217
  %318 = vmatpush1.bf16.msra.mxu0 %v216
  %319 = vmatprep.subr.bf16.mxu0 0
  %320 = vmatpush1.bf16.msra.mxu0 0
  %321 = vmatprep.subr.bf16.mxu0 0
  %322 = vmatpush1.bf16.msra.mxu0 0
  %323 = vmatprep.subr.bf16.mxu0 0
  %324 = vmatpush1.bf16.msra.mxu0 0
  %325 = vmatprep.subr.bf16.mxu0 0
  %326 = vmatpush1.bf16.msra.mxu0 0
  %327 = vmatprep.subr.bf16.mxu0 0
  %328 = vmatpush1.bf16.msra.mxu0 0
  %329 = vmatprep.subr.bf16.mxu0 0
  %330 = vmatpush1.bf16.msra.mxu0 0
  %331 = vmatprep.subr.bf16.mxu0 0
  %332 = vmatpush1.bf16.msra.mxu0 0
  %333 = vmatprep.mubr.bf16.mxu0 %v256
  %334 = vmatmul.mubr.bf16.gmra.mrb[0].mxu0 %v71
  %v335 = vpop.f32.mrb[0].mxu0
  %v336 = vadd.f32 %v58, %v335
  %v337 = vpop.f32.mrb[0].mxu0
  %v338 = vadd.f32 %v58, %v337
  %v339 = vpop.f32.mrb[0].mxu0
  %v340 = vadd.f32 %v63, %v339
  %v341 = vpop.f32.mrb[0].mxu0
  %v342 = vadd.f32 %v63, %v341
  %343 = vdwg.mxu0
  %v344 = vmax.f32 %v293, 0.0
  %v345 = vmax.f32 %v295, 0.0
  %v346 = vmax.f32 %v336, 0.0
  %v347 = vmax.f32 %v338, 0.0
  %v348 = vmax.f32 %v297, 0.0
  %v349 = vmax.f32 %v299, 0.0
  %v350 = vmax.f32 %v340, 0.0
  %v351 = vmax.f32 %v342, 0.0
  %v352 = vpack.c.bf16 %v348, %v344
  %v353 = vpack.c.bf16 %v349, %v345
  %v354 = vpack.c.bf16 %v350, %v346
  %v355 = vpack.c.bf16 %v351, %v347
  %v360 = vunpack.c.l.b16 %v352
  %v361 = vunpack.c.l.b16 %v353
  %v362 = vunpack.c.l.b16 %v354
  %v363 = vunpack.c.l.b16 %v355
  %v364 = vunpack.c.h.b16 %v352
  %v365 = vunpack.c.h.b16 %v353
  %v366 = vunpack.c.h.b16 %v354
  %v367 = vunpack.c.h.b16 %v355
  %v368 = vpack.c.b16 %v361, %v360
  %v369 = vpack.c.b16 %v363, %v362
  %v370 = vpack.c.b16 %v365, %v364
  %v371 = vpack.c.b16 %v367, %v366
  %376 = vst [vmem:[%s3] sm:$0xff] %v368
  %377 = vst [vmem:[%s3 + $0x8] sm:$0xff] %v369
  %378 = vst [vmem:[%s3 + $0x10] sm:$0xff] %v370
  %379 = vst [vmem:[%s3 + $0x18] sm:$0xff] %v371
  // Predicated region
  $region14: #{cifar_rir_forward.7} parent=0 // pred_check
    _
  $region15: #{cifar_rir_forward.7} parent=0 // pred_check_branch
    %381 = sbr.rel (0) target = $region17
  $region16: #{cifar_rir_forward.7} parent=0 // pred_region
    _
  $region17: #{cifar_rir_forward.7} parent=0 // pred_fallthru
    _
  // Predicated region
  $region18: #{cifar_rir_forward.7} parent=0 // pred_check
    _
  $region19: #{cifar_rir_forward.7} parent=0 // pred_check_branch
    %383 = sbr.rel (0) target = $region21
  $region20: #{cifar_rir_forward.7} parent=0 // pred_region
    _
  $region21: #{cifar_rir_forward.7} parent=0 // pred_fallthru
    _

// kernel: cifar_rir_forward.9
$region0: #{cifar_rir_forward.9}
  #allocation0 [shape = 'u32[]', space=smem, size = 0x4, offset = 0x4, fixed_abs, tag = 'smem constant byte address 0x4 - core index']
  #allocation1 [shape = 'u32[144,128]{1,0:T(1,128)}', space=vmem, size = 0x12000, scoped, tag = 'internal scratch']
  %s0 = inlined_call_operand.vmem [shape: bf16[32,144], index: 0, kind: input, shape index: {}]
  %s1 = inlined_call_operand.vmem [shape: bf16[144,128], index: 1, kind: input, shape index: {}]
  %s2 = inlined_call_operand.vmem [shape: f32[32,1], index: 2, kind: input, shape index: {}]
  %s3 = inlined_call_operand.vmem [shape: bf16[32,128], index: 3, kind: output, shape index: {}]
  %s4 = sld [smem:[#allocation0]]
  $region22: #{cifar_rir_forward.9} parent=0
    _
  %s6 = ssub.s32 1, %s4
  %s7 = scalar_select 0, %s6, %s4
  // Predicated region
  $region2: #{cifar_rir_forward.9} parent=0 // pred_check
    _
  $region3: #{cifar_rir_forward.9} parent=0 // pred_check_branch
    %9 = sbr.rel (0) target = $region5
  $region4: #{cifar_rir_forward.9} parent=0 // pred_region
    _
  $region5: #{cifar_rir_forward.9} parent=0 // pred_fallthru
    _
  // Predicated region
  $region6: #{cifar_rir_forward.9} parent=0 // pred_check
    _
  $region7: #{cifar_rir_forward.9} parent=0 // pred_check_branch
    %11 = sbr.rel (0) target = $region9
  $region8: #{cifar_rir_forward.9} parent=0 // pred_region
    _
  $region9: #{cifar_rir_forward.9} parent=0 // pred_fallthru
    _
  // Predicated region
  $region10: #{cifar_rir_forward.9} parent=0 // pred_check
    _
  $region11: #{cifar_rir_forward.9} parent=0 // pred_check_branch
    %13 = sbr.rel (0) target = $region13
  $region12: #{cifar_rir_forward.9} parent=0 // pred_region
    _
  $region13: #{cifar_rir_forward.9} parent=0 // pred_fallthru
    _
  %v15 = vld [vmem:[%s0] sm:$0xff]
  %v16 = vld [vmem:[%s0 + $0x8] sm:$0xff]
  %v17 = vld [vmem:[%s0 + $0x10] sm:$0xff]
  %v18 = vld [vmem:[%s0 + $0x18] sm:$0xff]
  %v19 = vld [vmem:[%s1] sm:$0xf]
  %v20 = vld [vmem:[%s1 + $0x4] sm:$0xf]
  %v21 = vld [vmem:[%s1 + $0x8] sm:$0xf]
  %v22 = vld [vmem:[%s1 + $0xc] sm:$0xf]
  %v23 = vld [vmem:[%s1 + $0x10] sm:$0xf]
  %v24 = vld [vmem:[%s1 + $0x14] sm:$0xf]
  %v25 = vld [vmem:[%s1 + $0x18] sm:$0xf]
  %v26 = vld [vmem:[%s1 + $0x1c] sm:$0xf]
  %v27 = vld [vmem:[%s1 + $0x20] sm:$0xf]
  %v28 = vld [vmem:[%s1 + $0x24] sm:$0xf]
  %v29 = vld [vmem:[%s1 + $0x28] sm:$0xf]
  %v30 = vld [vmem:[%s1 + $0x2c] sm:$0xf]
  %v31 = vld [vmem:[%s1 + $0x30] sm:$0xf]
  %v32 = vld [vmem:[%s1 + $0x34] sm:$0xf]
  %v33 = vld [vmem:[%s1 + $0x38] sm:$0xf]
  %v34 = vld [vmem:[%s1 + $0x3c] sm:$0xf]
  %v35 = vld [vmem:[%s1 + $0x40] sm:$0xf]
  %v36 = vld [vmem:[%s1 + $0x44] sm:$0xf]
  %v37 = vld [vmem:[%s2] sm:$0xff]
  %v38 = vld [vmem:[%s2 + $0x8] sm:$0xff]
  %v39 = vld [vmem:[%s2 + $0x10] sm:$0xff]
  %v40 = vld [vmem:[%s2 + $0x18] sm:$0xff]
  %42 = vset.pattern.permute.xlu0 0
  %43 = vperm.xlu0 %42, %v37
  %v44 = vpop.permute.xlu0 %43
  %47 = vset.pattern.permute.xlu0 0
  %48 = vperm.xlu0 %47, %v38
  %v49 = vpop.permute.xlu0 %48
  %52 = vset.pattern.permute.xlu0 0
  %53 = vperm.xlu0 %52, %v39
  %v54 = vpop.permute.xlu0 %53
  %57 = vset.pattern.permute.xlu0 0
  %58 = vperm.xlu0 %57, %v40
  %v59 = vpop.permute.xlu0 %58
  %v65 = vunpack.c.l.b16 %v15
  %v66 = vunpack.c.h.b16 %v15
  %v67 = vunpack.c.l.b16 %v16
  %v68 = vunpack.c.h.b16 %v16
  %v69 = vunpack.c.l.b16 %v17
  %v70 = vunpack.c.h.b16 %v17
  %v71 = vunpack.c.l.b16 %v18
  %v72 = vunpack.c.h.b16 %v18
  %v73 = vpack.c.b16 %v67, %v65
  %v74 = vpack.c.b16 %v68, %v66
  %v75 = vpack.c.b16 %v71, %v69
  %v76 = vpack.c.b16 %v72, %v70
  %v97 = vunpack.c.l.b16 %v19
  %v98 = vunpack.c.l.b16 %v20
  %v99 = vunpack.c.l.b16 %v21
  %v100 = vunpack.c.l.b16 %v22
  %v101 = vunpack.c.l.b16 %v23
  %v102 = vunpack.c.l.b16 %v24
  %v103 = vunpack.c.l.b16 %v25
  %v104 = vunpack.c.l.b16 %v26
  %v105 = vunpack.c.l.b16 %v27
  %v106 = vunpack.c.l.b16 %v28
  %v107 = vunpack.c.l.b16 %v29
  %v108 = vunpack.c.l.b16 %v30
  %v109 = vunpack.c.l.b16 %v31
  %v110 = vunpack.c.l.b16 %v32
  %v111 = vunpack.c.l.b16 %v33
  %v112 = vunpack.c.l.b16 %v34
  %v113 = vunpack.c.l.b16 %v35
  %v114 = vunpack.c.l.b16 %v36
  %v115 = vpack.c.b16 %v98, %v97
  %v116 = vpack.c.b16 %v100, %v99
  %v117 = vpack.c.b16 %v102, %v101
  %v118 = vpack.c.b16 %v104, %v103
  %v119 = vpack.c.b16 %v106, %v105
  %v120 = vpack.c.b16 %v108, %v107
  %v121 = vpack.c.b16 %v110, %v109
  %v122 = vpack.c.b16 %v112, %v111
  %v123 = vpack.c.b16 %v114, %v113
  %vm133 = vcmask 130048
  %v135 = vsel %vm133, %v74, 0
  %v138 = vsel %vm133, %v76, 0
  %140 = vmatprep.subr.bf16.mxu0 0
  %141 = vmatpush1.bf16.msra.mxu0 %v115
  %142 = vmatprep.subr.bf16.mxu0 0
  %143 = vmatpush1.bf16.msra.mxu0 %v116
  %144 = vmatprep.subr.bf16.mxu0 0
  %145 = vmatpush1.bf16.msra.mxu0 %v117
  %146 = vmatprep.subr.bf16.mxu0 0
  %147 = vmatpush1.bf16.msra.mxu0 %v118
  %148 = vmatprep.subr.bf16.mxu0 0
  %149 = vmatpush1.bf16.msra.mxu0 %v119
  %150 = vmatprep.subr.bf16.mxu0 0
  %151 = vmatpush1.bf16.msra.mxu0 %v120
  %152 = vmatprep.subr.bf16.mxu0 0
  %153 = vmatpush1.bf16.msra.mxu0 %v121
  %154 = vmatprep.subr.bf16.mxu0 0
  %155 = vmatpush1.bf16.msra.mxu0 %v122
  %156 = vmatprep.subr.bf16.mxu0 0
  %157 = vmatpush1.bf16.msra.mxu0 %v123
  %158 = vmatprep.subr.bf16.mxu0 0
  %159 = vmatpush1.bf16.msra.mxu0 0
  %160 = vmatprep.subr.bf16.mxu0 0
  %161 = vmatpush1.bf16.msra.mxu0 0
  %162 = vmatprep.subr.bf16.mxu0 0
  %163 = vmatpush1.bf16.msra.mxu0 0
  %164 = vmatprep.subr.bf16.mxu0 0
  %165 = vmatpush1.bf16.msra.mxu0 0
  %166 = vmatprep.subr.bf16.mxu0 0
  %167 = vmatpush1.bf16.msra.mxu0 0
  %168 = vmatprep.subr.bf16.mxu0 0
  %169 = vmatpush1.bf16.msra.mxu0 0
  %170 = vmatprep.subr.bf16.mxu0 0
  %171 = vmatpush1.bf16.msra.mxu0 0
  %172 = vmatprep.mubr.bf16.mxu0 %v135
  %173 = vmatmul.mubr.bf16.gmra.mrb[0].mxu0 %v73
  %v174 = vpop.f32.mrb[0].mxu0
  %v175 = vadd.f32 %v44, %v174
  %v176 = vpop.f32.mrb[0].mxu0
  %v177 = vpop.f32.mrb[0].mxu0
  %v178 = vadd.f32 %v49, %v177
  %v179 = vpop.f32.mrb[0].mxu0
  %180 = vmatprep.mubr.bf16.mxu0 %v138
  %181 = vmatmul.mubr.bf16.gmra.mrb[0].mxu0 %v75
  %v182 = vpop.f32.mrb[0].mxu0
  %v183 = vadd.f32 %v54, %v182
  %v184 = vpop.f32.mrb[0].mxu0
  %v185 = vpop.f32.mrb[0].mxu0
  %v186 = vadd.f32 %v59, %v185
  %v187 = vpop.f32.mrb[0].mxu0
  %188 = vdwg.mxu0
  %v189 = vmax.f32 %v175, 0.0
  %v190 = vmax.f32 %v178, 0.0
  %v191 = vmax.f32 %v183, 0.0
  %v192 = vmax.f32 %v186, 0.0
  %v193 = vpack.c.bf16 %v190, %v189
  %v194 = vpack.c.bf16 %v192, %v191
  %v197 = vunpack.c.l.b16 %v193
  %v198 = vunpack.c.h.b16 %v193
  %v199 = vunpack.c.l.b16 %v194
  %v200 = vunpack.c.h.b16 %v194
  %v201 = vpack.c.b16 %v197, %v197
  %v202 = vpack.c.b16 %v198, %v198
  %v203 = vpack.c.b16 %v199, %v199
  %v204 = vpack.c.b16 %v200, %v200
  %209 = vst [vmem:[%s3] sm:$0xf] %v201
  %210 = vst [vmem:[%s3 + $0x4] sm:$0xf] %v202
  %211 = vst [vmem:[%s3 + $0x8] sm:$0xf] %v203
  %212 = vst [vmem:[%s3 + $0xc] sm:$0xf] %v204
  // Predicated region
  $region14: #{cifar_rir_forward.9} parent=0 // pred_check
    _
  $region15: #{cifar_rir_forward.9} parent=0 // pred_check_branch
    %214 = sbr.rel (0) target = $region17
  $region16: #{cifar_rir_forward.9} parent=0 // pred_region
    _
  $region17: #{cifar_rir_forward.9} parent=0 // pred_fallthru
    _
  // Predicated region
  $region18: #{cifar_rir_forward.9} parent=0 // pred_check
    _
  $region19: #{cifar_rir_forward.9} parent=0 // pred_check_branch
    %216 = sbr.rel (0) target = $region21
  $region20: #{cifar_rir_forward.9} parent=0 // pred_region
    _
  $region21: #{cifar_rir_forward.9} parent=0 // pred_fallthru
    _

// kernel: cifar_rir_forward.10
$region0: #{cifar_rir_forward.10}
  #allocation0 [shape = 'u32[]', space=smem, size = 0x4, offset = 0x4, fixed_abs, tag = 'smem constant byte address 0x4 - core index']
  #allocation1 [shape = 'u32[144,128]{1,0:T(1,128)}', space=vmem, size = 0x12000, scoped, tag = 'internal scratch']
  %s0 = inlined_call_operand.vmem [shape: bf16[32,288], index: 0, kind: input, shape index: {}]
  %s1 = inlined_call_operand.vmem [shape: bf16[288,128], index: 1, kind: input, shape index: {}]
  %s2 = inlined_call_operand.vmem [shape: f32[32,1], index: 2, kind: input, shape index: {}]
  %s3 = inlined_call_operand.vmem [shape: bf16[32,128], index: 3, kind: output, shape index: {}]
  %s4 = sld [smem:[#allocation0]]
  $region22: #{cifar_rir_forward.10} parent=0
    _
  %s6 = ssub.s32 1, %s4
  %s7 = scalar_select 0, %s6, %s4
  // Predicated region
  $region2: #{cifar_rir_forward.10} parent=0 // pred_check
    _
  $region3: #{cifar_rir_forward.10} parent=0 // pred_check_branch
    %9 = sbr.rel (0) target = $region5
  $region4: #{cifar_rir_forward.10} parent=0 // pred_region
    _
  $region5: #{cifar_rir_forward.10} parent=0 // pred_fallthru
    _
  // Predicated region
  $region6: #{cifar_rir_forward.10} parent=0 // pred_check
    _
  $region7: #{cifar_rir_forward.10} parent=0 // pred_check_branch
    %11 = sbr.rel (0) target = $region9
  $region8: #{cifar_rir_forward.10} parent=0 // pred_region
    _
  $region9: #{cifar_rir_forward.10} parent=0 // pred_fallthru
    _
  // Predicated region
  $region10: #{cifar_rir_forward.10} parent=0 // pred_check
    _
  $region11: #{cifar_rir_forward.10} parent=0 // pred_check_branch
    %13 = sbr.rel (0) target = $region13
  $region12: #{cifar_rir_forward.10} parent=0 // pred_region
    _
  $region13: #{cifar_rir_forward.10} parent=0 // pred_fallthru
    _
  %v15 = vld [vmem:[%s0] sm:$0xff]
  %v16 = vld [vmem:[%s0 + $0x8] sm:$0xf]
  %v17 = vld [vmem:[%s0 + $0xc] sm:$0xff]
  %v18 = vld [vmem:[%s0 + $0x14] sm:$0xf]
  %v19 = vld [vmem:[%s0 + $0x18] sm:$0xff]
  %v20 = vld [vmem:[%s0 + $0x20] sm:$0xf]
  %v21 = vld [vmem:[%s0 + $0x24] sm:$0xff]
  %v22 = vld [vmem:[%s0 + $0x2c] sm:$0xf]
  %v23 = vld [vmem:[%s1] sm:$0xf]
  %v24 = vld [vmem:[%s1 + $0x4] sm:$0xf]
  %v25 = vld [vmem:[%s1 + $0x8] sm:$0xf]
  %v26 = vld [vmem:[%s1 + $0xc] sm:$0xf]
  %v27 = vld [vmem:[%s1 + $0x10] sm:$0xf]
  %v28 = vld [vmem:[%s1 + $0x14] sm:$0xf]
  %v29 = vld [vmem:[%s1 + $0x18] sm:$0xf]
  %v30 = vld [vmem:[%s1 + $0x1c] sm:$0xf]
  %v31 = vld [vmem:[%s1 + $0x20] sm:$0xf]
  %v32 = vld [vmem:[%s1 + $0x24] sm:$0xf]
  %v33 = vld [vmem:[%s1 + $0x28] sm:$0xf]
  %v34 = vld [vmem:[%s1 + $0x2c] sm:$0xf]
  %v35 = vld [vmem:[%s1 + $0x30] sm:$0xf]
  %v36 = vld [vmem:[%s1 + $0x34] sm:$0xf]
  %v37 = vld [vmem:[%s1 + $0x38] sm:$0xf]
  %v38 = vld [vmem:[%s1 + $0x3c] sm:$0xf]
  %v39 = vld [vmem:[%s1 + $0x40] sm:$0xf]
  %v40 = vld [vmem:[%s1 + $0x44] sm:$0xf]
  %v41 = vld [vmem:[%s1 + $0x48] sm:$0xf]
  %v42 = vld [vmem:[%s1 + $0x4c] sm:$0xf]
  %v43 = vld [vmem:[%s1 + $0x50] sm:$0xf]
  %v44 = vld [vmem:[%s1 + $0x54] sm:$0xf]
  %v45 = vld [vmem:[%s1 + $0x58] sm:$0xf]
  %v46 = vld [vmem:[%s1 + $0x5c] sm:$0xf]
  %v47 = vld [vmem:[%s1 + $0x60] sm:$0xf]
  %v48 = vld [vmem:[%s1 + $0x64] sm:$0xf]
  %v49 = vld [vmem:[%s1 + $0x68] sm:$0xf]
  %v50 = vld [vmem:[%s1 + $0x6c] sm:$0xf]
  %v51 = vld [vmem:[%s1 + $0x70] sm:$0xf]
  %v52 = vld [vmem:[%s1 + $0x74] sm:$0xf]
  %v53 = vld [vmem:[%s1 + $0x78] sm:$0xf]
  %v54 = vld [vmem:[%s1 + $0x7c] sm:$0xf]
  %v55 = vld [vmem:[%s1 + $0x80] sm:$0xf]
  %v56 = vld [vmem:[%s1 + $0x84] sm:$0xf]
  %v57 = vld [vmem:[%s1 + $0x88] sm:$0xf]
  %v58 = vld [vmem:[%s1 + $0x8c] sm:$0xf]
  %v59 = vld [vmem:[%s2] sm:$0xff]
  %v60 = vld [vmem:[%s2 + $0x8] sm:$0xff]
  %v61 = vld [vmem:[%s2 + $0x10] sm:$0xff]
  %v62 = vld [vmem:[%s2 + $0x18] sm:$0xff]
  %64 = vset.pattern.permute.xlu0 0
  %65 = vperm.xlu0 %64, %v59
  %v66 = vpop.permute.xlu0 %65
  %69 = vset.pattern.permute.xlu0 0
  %70 = vperm.xlu0 %69, %v60
  %v71 = vpop.permute.xlu0 %70
  %74 = vset.pattern.permute.xlu0 0
  %75 = vperm.xlu0 %74, %v61
  %v76 = vpop.permute.xlu0 %75
  %79 = vset.pattern.permute.xlu0 0
  %80 = vperm.xlu0 %79, %v62
  %v81 = vpop.permute.xlu0 %80
  %v91 = vunpack.c.l.b16 %v15
  %v92 = vunpack.c.h.b16 %v15
  %v93 = vunpack.c.l.b16 %v16
  %v94 = vunpack.c.l.b16 %v17
  %v95 = vunpack.c.h.b16 %v17
  %v96 = vunpack.c.l.b16 %v18
  %v97 = vunpack.c.l.b16 %v19
  %v98 = vunpack.c.h.b16 %v19
  %v99 = vunpack.c.l.b16 %v20
  %v100 = vunpack.c.l.b16 %v21
  %v101 = vunpack.c.h.b16 %v21
  %v102 = vunpack.c.l.b16 %v22
  %v103 = vpack.c.b16 %v94, %v91
  %v104 = vpack.c.b16 %v95, %v92
  %v105 = vpack.c.b16 %v96, %v93
  %v106 = vpack.c.b16 %v100, %v97
  %v107 = vpack.c.b16 %v101, %v98
  %v108 = vpack.c.b16 %v102, %v99
  %v149 = vunpack.c.l.b16 %v23
  %v150 = vunpack.c.l.b16 %v24
  %v151 = vunpack.c.l.b16 %v25
  %v152 = vunpack.c.l.b16 %v26
  %v153 = vunpack.c.l.b16 %v27
  %v154 = vunpack.c.l.b16 %v28
  %v155 = vunpack.c.l.b16 %v29
  %v156 = vunpack.c.l.b16 %v30
  %v157 = vunpack.c.l.b16 %v31
  %v158 = vunpack.c.l.b16 %v32
  %v159 = vunpack.c.l.b16 %v33
  %v160 = vunpack.c.l.b16 %v34
  %v161 = vunpack.c.l.b16 %v35
  %v162 = vunpack.c.l.b16 %v36
  %v163 = vunpack.c.l.b16 %v37
  %v164 = vunpack.c.l.b16 %v38
  %v165 = vunpack.c.l.b16 %v39
  %v166 = vunpack.c.l.b16 %v40
  %v167 = vunpack.c.l.b16 %v41
  %v168 = vunpack.c.l.b16 %v42
  %v169 = vunpack.c.l.b16 %v43
  %v170 = vunpack.c.l.b16 %v44
  %v171 = vunpack.c.l.b16 %v45
  %v172 = vunpack.c.l.b16 %v46
  %v173 = vunpack.c.l.b16 %v47
  %v174 = vunpack.c.l.b16 %v48
  %v175 = vunpack.c.l.b16 %v49
  %v176 = vunpack.c.l.b16 %v50
  %v177 = vunpack.c.l.b16 %v51
  %v178 = vunpack.c.l.b16 %v52
  %v179 = vunpack.c.l.b16 %v53
  %v180 = vunpack.c.l.b16 %v54
  %v181 = vunpack.c.l.b16 %v55
  %v182 = vunpack.c.l.b16 %v56
  %v183 = vunpack.c.l.b16 %v57
  %v184 = vunpack.c.l.b16 %v58
  %v185 = vpack.c.b16 %v150, %v149
  %v186 = vpack.c.b16 %v152, %v151
  %v187 = vpack.c.b16 %v154, %v153
  %v188 = vpack.c.b16 %v156, %v155
  %v189 = vpack.c.b16 %v158, %v157
  %v190 = vpack.c.b16 %v160, %v159
  %v191 = vpack.c.b16 %v162, %v161
  %v192 = vpack.c.b16 %v164, %v163
  %v193 = vpack.c.b16 %v166, %v165
  %v194 = vpack.c.b16 %v168, %v167
  %v195 = vpack.c.b16 %v170, %v169
  %v196 = vpack.c.b16 %v172, %v171
  %v197 = vpack.c.b16 %v174, %v173
  %v198 = vpack.c.b16 %v176, %v175
  %v199 = vpack.c.b16 %v178, %v177
  %v200 = vpack.c.b16 %v180, %v179
  %v201 = vpack.c.b16 %v182, %v181
  %v202 = vpack.c.b16 %v184, %v183
  %vm221 = vcmask 261120
  %v223 = vsel %vm221, %v105, 0
  %v226 = vsel %vm221, %v108, 0
  %228 = vmatprep.subr.bf16.mxu0 0
  %229 = vmatpush1.bf16.msra.mxu0 %v185
  %230 = vmatprep.subr.bf16.mxu0 0
  %231 = vmatpush1.bf16.msra.mxu0 %v186
  %232 = vmatprep.subr.bf16.mxu0 0
  %233 = vmatpush1.bf16.msra.mxu0 %v187
  %234 = vmatprep.subr.bf16.mxu0 0
  %235 = vmatpush1.bf16.msra.mxu0 %v188
  %236 = vmatprep.subr.bf16.mxu0 0
  %237 = vmatpush1.bf16.msra.mxu0 %v189
  %238 = vmatprep.subr.bf16.mxu0 0
  %239 = vmatpush1.bf16.msra.mxu0 %v190
  %240 = vmatprep.subr.bf16.mxu0 0
  %241 = vmatpush1.bf16.msra.mxu0 %v191
  %242 = vmatprep.subr.bf16.mxu0 0
  %243 = vmatpush1.bf16.msra.mxu0 %v192
  %244 = vmatprep.subr.bf16.mxu0 0
  %245 = vmatpush1.bf16.msra.mxu0 %v193
  %246 = vmatprep.subr.bf16.mxu0 0
  %247 = vmatpush1.bf16.msra.mxu0 %v194
  %248 = vmatprep.subr.bf16.mxu0 0
  %249 = vmatpush1.bf16.msra.mxu0 %v195
  %250 = vmatprep.subr.bf16.mxu0 0
  %251 = vmatpush1.bf16.msra.mxu0 %v196
  %252 = vmatprep.subr.bf16.mxu0 0
  %253 = vmatpush1.bf16.msra.mxu0 %v197
  %254 = vmatprep.subr.bf16.mxu0 0
  %255 = vmatpush1.bf16.msra.mxu0 %v198
  %256 = vmatprep.subr.bf16.mxu0 0
  %257 = vmatpush1.bf16.msra.mxu0 %v199
  %258 = vmatprep.subr.bf16.mxu0 0
  %259 = vmatpush1.bf16.msra.mxu0 %v200
  %260 = vmatprep.mubr.bf16.mxu0 %v104
  %261 = vmatmul.mubr.bf16.gmra.mrb[0].mxu0 %v103
  %v262 = vpop.f32.mrb[0].mxu0
  %v263 = vadd.f32 %v66, %v262
  %v264 = vpop.f32.mrb[0].mxu0
  %v265 = vpop.f32.mrb[0].mxu0
  %v266 = vadd.f32 %v71, %v265
  %v267 = vpop.f32.mrb[0].mxu0
  %268 = vmatprep.mubr.bf16.mxu0 %v107
  %269 = vmatmul.mubr.bf16.gmra.mrb[0].mxu0 %v106
  %v270 = vpop.f32.mrb[0].mxu0
  %v271 = vadd.f32 %v76, %v270
  %v272 = vpop.f32.mrb[0].mxu0
  %v273 = vpop.f32.mrb[0].mxu0
  %v274 = vadd.f32 %v81, %v273
  %v275 = vpop.f32.mrb[0].mxu0
  %276 = vdwg.mxu0
  %277 = vmatprep.subr.bf16.mxu0 0
  %278 = vmatpush1.bf16.msra.mxu0 %v201
  %279 = vmatprep.subr.bf16.mxu0 0
  %280 = vmatpush1.bf16.msra.mxu0 %v202
  %281 = vmatprep.subr.bf16.mxu0 0
  %282 = vmatpush1.bf16.msra.mxu0 0
  %283 = vmatprep.subr.bf16.mxu0 0
  %284 = vmatpush1.bf16.msra.mxu0 0
  %285 = vmatprep.subr.bf16.mxu0 0
  %286 = vmatpush1.bf16.msra.mxu0 0
  %287 = vmatprep.subr.bf16.mxu0 0
  %288 = vmatpush1.bf16.msra.mxu0 0
  %289 = vmatprep.subr.bf16.mxu0 0
  %290 = vmatpush1.bf16.msra.mxu0 0
  %291 = vmatprep.subr.bf16.mxu0 0
  %292 = vmatpush1.bf16.msra.mxu0 0
  %293 = vmatprep.subr.bf16.mxu0 0
  %294 = vmatpush1.bf16.msra.mxu0 0
  %295 = vmatprep.subr.bf16.mxu0 0
  %296 = vmatpush1.bf16.msra.mxu0 0
  %297 = vmatprep.subr.bf16.mxu0 0
  %298 = vmatpush1.bf16.msra.mxu0 0
  %299 = vmatprep.subr.bf16.mxu0 0
  %300 = vmatpush1.bf16.msra.mxu0 0
  %301 = vmatprep.subr.bf16.mxu0 0
  %302 = vmatpush1.bf16.msra.mxu0 0
  %303 = vmatprep.subr.bf16.mxu0 0
  %304 = vmatpush1.bf16.msra.mxu0 0
  %305 = vmatprep.subr.bf16.mxu0 0
  %306 = vmatpush1.bf16.msra.mxu0 0
  %307 = vmatprep.subr.bf16.mxu0 0
  %308 = vmatpush1.bf16.msra.mxu0 0
  %309 = vmatprep.mubr.bf16.mxu0 0
  %310 = vmatmul.mubr.bf16.gmra.mrb[0].mxu0 %v223
  %v311 = vpop.f32.mrb[0].mxu0
  %v312 = vadd.f32 %v263, %v311
  %v313 = vpop.f32.mrb[0].mxu0
  %v314 = vpop.f32.mrb[0].mxu0
  %v315 = vadd.f32 %v266, %v314
  %v316 = vpop.f32.mrb[0].mxu0
  %317 = vmatprep.mubr.bf16.mxu0 0
  %318 = vmatmul.mubr.bf16.gmra.mrb[0].mxu0 %v226
  %v319 = vpop.f32.mrb[0].mxu0
  %v320 = vadd.f32 %v271, %v319
  %v321 = vpop.f32.mrb[0].mxu0
  %v322 = vpop.f32.mrb[0].mxu0
  %v323 = vadd.f32 %v274, %v322
  %v324 = vpop.f32.mrb[0].mxu0
  %325 = vdwg.mxu0
  %v326 = vmax.f32 %v312, 0.0
  %v327 = vmax.f32 %v315, 0.0
  %v328 = vmax.f32 %v320, 0.0
  %v329 = vmax.f32 %v323, 0.0
  %v330 = vpack.c.bf16 %v327, %v326
  %v331 = vpack.c.bf16 %v329, %v328
  %v334 = vunpack.c.l.b16 %v330
  %v335 = vunpack.c.h.b16 %v330
  %v336 = vunpack.c.l.b16 %v331
  %v337 = vunpack.c.h.b16 %v331
  %v338 = vpack.c.b16 %v334, %v334
  %v339 = vpack.c.b16 %v335, %v335
  %v340 = vpack.c.b16 %v336, %v336
  %v341 = vpack.c.b16 %v337, %v337
  %346 = vst [vmem:[%s3] sm:$0xf] %v338
  %347 = vst [vmem:[%s3 + $0x4] sm:$0xf] %v339
  %348 = vst [vmem:[%s3 + $0x8] sm:$0xf] %v340
  %349 = vst [vmem:[%s3 + $0xc] sm:$0xf] %v341
  // Predicated region
  $region14: #{cifar_rir_forward.10} parent=0 // pred_check
    _
  $region15: #{cifar_rir_forward.10} parent=0 // pred_check_branch
    %351 = sbr.rel (0) target = $region17
  $region16: #{cifar_rir_forward.10} parent=0 // pred_region
    _
  $region17: #{cifar_rir_forward.10} parent=0 // pred_fallthru
    _
  // Predicated region
  $region18: #{cifar_rir_forward.10} parent=0 // pred_check
    _
  $region19: #{cifar_rir_forward.10} parent=0 // pred_check_branch
    %353 = sbr.rel (0) target = $region21
  $region20: #{cifar_rir_forward.10} parent=0 // pred_region
    _
  $region21: #{cifar_rir_forward.10} parent=0 // pred_fallthru
    _

// kernel: cifar_rir_forward.11
$region0: #{cifar_rir_forward.11}
  #allocation0 [shape = 'u32[]', space=smem, size = 0x4, offset = 0x4, fixed_abs, tag = 'smem constant byte address 0x4 - core index']
  #allocation1 [shape = 'u32[144,128]{1,0:T(1,128)}', space=vmem, size = 0x12000, scoped, tag = 'internal scratch']
  %s0 = inlined_call_operand.vmem [shape: bf16[32,2,64], index: 0, kind: input, shape index: {}]
  %s1 = inlined_call_operand.vmem [shape: f32[10,32], index: 1, kind: input, shape index: {}]
  %s2 = inlined_call_operand.vmem [shape: f32[10,1], index: 2, kind: input, shape index: {}]
  %s3 = inlined_call_operand.vmem [shape: f32[10,2], index: 3, kind: output, shape index: {}]
  %s4 = sld [smem:[#allocation0]]
  $region22: #{cifar_rir_forward.11} parent=0
    _
  %s6 = ssub.s32 1, %s4
  %s7 = scalar_select 0, %s6, %s4
  // Predicated region
  $region2: #{cifar_rir_forward.11} parent=0 // pred_check
    _
  $region3: #{cifar_rir_forward.11} parent=0 // pred_check_branch
    %9 = sbr.rel (0) target = $region5
  $region4: #{cifar_rir_forward.11} parent=0 // pred_region
    _
  $region5: #{cifar_rir_forward.11} parent=0 // pred_fallthru
    _
  // Predicated region
  $region6: #{cifar_rir_forward.11} parent=0 // pred_check
    _
  $region7: #{cifar_rir_forward.11} parent=0 // pred_check_branch
    %11 = sbr.rel (0) target = $region9
  $region8: #{cifar_rir_forward.11} parent=0 // pred_region
    _
  $region9: #{cifar_rir_forward.11} parent=0 // pred_fallthru
    _
  // Predicated region
  $region10: #{cifar_rir_forward.11} parent=0 // pred_check
    _
  $region11: #{cifar_rir_forward.11} parent=0 // pred_check_branch
    %13 = sbr.rel (0) target = $region13
  $region12: #{cifar_rir_forward.11} parent=0 // pred_region
    _
  $region13: #{cifar_rir_forward.11} parent=0 // pred_fallthru
    _
  %v14 = vld [vmem:[%s0] sm:$0x1]
  %v15 = vld [vmem:[%s0 + $0x1] sm:$0x1]
  %v16 = vld [vmem:[%s0 + $0x2] sm:$0x1]
  %v17 = vld [vmem:[%s0 + $0x3] sm:$0x1]
  %v18 = vld [vmem:[%s0 + $0x4] sm:$0x1]
  %v19 = vld [vmem:[%s0 + $0x5] sm:$0x1]
  %v20 = vld [vmem:[%s0 + $0x6] sm:$0x1]
  %v21 = vld [vmem:[%s0 + $0x7] sm:$0x1]
  %v22 = vld [vmem:[%s0 + $0x8] sm:$0x1]
  %v23 = vld [vmem:[%s0 + $0x9] sm:$0x1]
  %v24 = vld [vmem:[%s0 + $0xa] sm:$0x1]
  %v25 = vld [vmem:[%s0 + $0xb] sm:$0x1]
  %v26 = vld [vmem:[%s0 + $0xc] sm:$0x1]
  %v27 = vld [vmem:[%s0 + $0xd] sm:$0x1]
  %v28 = vld [vmem:[%s0 + $0xe] sm:$0x1]
  %v29 = vld [vmem:[%s0 + $0xf] sm:$0x1]
  %v30 = vld [vmem:[%s0 + $0x10] sm:$0x1]
  %v31 = vld [vmem:[%s0 + $0x11] sm:$0x1]
  %v32 = vld [vmem:[%s0 + $0x12] sm:$0x1]
  %v33 = vld [vmem:[%s0 + $0x13] sm:$0x1]
  %v34 = vld [vmem:[%s0 + $0x14] sm:$0x1]
  %v35 = vld [vmem:[%s0 + $0x15] sm:$0x1]
  %v36 = vld [vmem:[%s0 + $0x16] sm:$0x1]
  %v37 = vld [vmem:[%s0 + $0x17] sm:$0x1]
  %v38 = vld [vmem:[%s0 + $0x18] sm:$0x1]
  %v39 = vld [vmem:[%s0 + $0x19] sm:$0x1]
  %v40 = vld [vmem:[%s0 + $0x1a] sm:$0x1]
  %v41 = vld [vmem:[%s0 + $0x1b] sm:$0x1]
  %v42 = vld [vmem:[%s0 + $0x1c] sm:$0x1]
  %v43 = vld [vmem:[%s0 + $0x1d] sm:$0x1]
  %v44 = vld [vmem:[%s0 + $0x1e] sm:$0x1]
  %v45 = vld [vmem:[%s0 + $0x1f] sm:$0x1]
  %v46 = vunpack.c.l.bf16 %v14
  %v47 = vunpack.c.l.bf16 %v15
  %v48 = vunpack.c.l.bf16 %v16
  %v49 = vunpack.c.l.bf16 %v17
  %v50 = vunpack.c.l.bf16 %v18
  %v51 = vunpack.c.l.bf16 %v19
  %v52 = vunpack.c.l.bf16 %v20
  %v53 = vunpack.c.l.bf16 %v21
  %v54 = vunpack.c.l.bf16 %v22
  %v55 = vunpack.c.l.bf16 %v23
  %v56 = vunpack.c.l.bf16 %v24
  %v57 = vunpack.c.l.bf16 %v25
  %v58 = vunpack.c.l.bf16 %v26
  %v59 = vunpack.c.l.bf16 %v27
  %v60 = vunpack.c.l.bf16 %v28
  %v61 = vunpack.c.l.bf16 %v29
  %v62 = vunpack.c.l.bf16 %v30
  %v63 = vunpack.c.l.bf16 %v31
  %v64 = vunpack.c.l.bf16 %v32
  %v65 = vunpack.c.l.bf16 %v33
  %v66 = vunpack.c.l.bf16 %v34
  %v67 = vunpack.c.l.bf16 %v35
  %v68 = vunpack.c.l.bf16 %v36
  %v69 = vunpack.c.l.bf16 %v37
  %v70 = vunpack.c.l.bf16 %v38
  %v71 = vunpack.c.l.bf16 %v39
  %v72 = vunpack.c.l.bf16 %v40
  %v73 = vunpack.c.l.bf16 %v41
  %v74 = vunpack.c.l.bf16 %v42
  %v75 = vunpack.c.l.bf16 %v43
  %v76 = vunpack.c.l.bf16 %v44
  %v77 = vunpack.c.l.bf16 %v45
  %vm78 = vcmask 517120
  %v79 = vsel %vm78, %v46, 0.0
  %80 = vadd.xlane.f32.xlu0 %v79
  %v81 = vpop.xlane.xlu0 %80
  %v82 = vsel %vm78, %v47, 0.0
  %83 = vadd.xlane.f32.xlu0 %v82
  %v84 = vpop.xlane.xlu0 %83
  %v85 = vsel %vm78, %v48, 0.0
  %86 = vadd.xlane.f32.xlu0 %v85
  %v87 = vpop.xlane.xlu0 %86
  %v88 = vsel %vm78, %v49, 0.0
  %89 = vadd.xlane.f32.xlu0 %v88
  %v90 = vpop.xlane.xlu0 %89
  %v91 = vsel %vm78, %v50, 0.0
  %92 = vadd.xlane.f32.xlu0 %v91
  %v93 = vpop.xlane.xlu0 %92
  %v94 = vsel %vm78, %v51, 0.0
  %95 = vadd.xlane.f32.xlu0 %v94
  %v96 = vpop.xlane.xlu0 %95
  %v97 = vsel %vm78, %v52, 0.0
  %98 = vadd.xlane.f32.xlu0 %v97
  %v99 = vpop.xlane.xlu0 %98
  %v100 = vsel %vm78, %v53, 0.0
  %101 = vadd.xlane.f32.xlu0 %v100
  %v102 = vpop.xlane.xlu0 %101
  %v103 = vsel %vm78, %v54, 0.0
  %104 = vadd.xlane.f32.xlu0 %v103
  %v105 = vpop.xlane.xlu0 %104
  %v106 = vsel %vm78, %v55, 0.0
  %107 = vadd.xlane.f32.xlu0 %v106
  %v108 = vpop.xlane.xlu0 %107
  %v109 = vsel %vm78, %v56, 0.0
  %110 = vadd.xlane.f32.xlu0 %v109
  %v111 = vpop.xlane.xlu0 %110
  %v112 = vsel %vm78, %v57, 0.0
  %113 = vadd.xlane.f32.xlu0 %v112
  %v114 = vpop.xlane.xlu0 %113
  %v115 = vsel %vm78, %v58, 0.0
  %116 = vadd.xlane.f32.xlu0 %v115
  %v117 = vpop.xlane.xlu0 %116
  %v118 = vsel %vm78, %v59, 0.0
  %119 = vadd.xlane.f32.xlu0 %v118
  %v120 = vpop.xlane.xlu0 %119
  %v121 = vsel %vm78, %v60, 0.0
  %122 = vadd.xlane.f32.xlu0 %v121
  %v123 = vpop.xlane.xlu0 %122
  %v124 = vsel %vm78, %v61, 0.0
  %125 = vadd.xlane.f32.xlu0 %v124
  %v126 = vpop.xlane.xlu0 %125
  %v127 = vsel %vm78, %v62, 0.0
  %128 = vadd.xlane.f32.xlu0 %v127
  %v129 = vpop.xlane.xlu0 %128
  %v130 = vsel %vm78, %v63, 0.0
  %131 = vadd.xlane.f32.xlu0 %v130
  %v132 = vpop.xlane.xlu0 %131
  %v133 = vsel %vm78, %v64, 0.0
  %134 = vadd.xlane.f32.xlu0 %v133
  %v135 = vpop.xlane.xlu0 %134
  %v136 = vsel %vm78, %v65, 0.0
  %137 = vadd.xlane.f32.xlu0 %v136
  %v138 = vpop.xlane.xlu0 %137
  %v139 = vsel %vm78, %v66, 0.0
  %140 = vadd.xlane.f32.xlu0 %v139
  %v141 = vpop.xlane.xlu0 %140
  %v142 = vsel %vm78, %v67, 0.0
  %143 = vadd.xlane.f32.xlu0 %v142
  %v144 = vpop.xlane.xlu0 %143
  %v145 = vsel %vm78, %v68, 0.0
  %146 = vadd.xlane.f32.xlu0 %v145
  %v147 = vpop.xlane.xlu0 %146
  %v148 = vsel %vm78, %v69, 0.0
  %149 = vadd.xlane.f32.xlu0 %v148
  %v150 = vpop.xlane.xlu0 %149
  %v151 = vsel %vm78, %v70, 0.0
  %152 = vadd.xlane.f32.xlu0 %v151
  %v153 = vpop.xlane.xlu0 %152
  %v154 = vsel %vm78, %v71, 0.0
  %155 = vadd.xlane.f32.xlu0 %v154
  %v156 = vpop.xlane.xlu0 %155
  %v157 = vsel %vm78, %v72, 0.0
  %158 = vadd.xlane.f32.xlu0 %v157
  %v159 = vpop.xlane.xlu0 %158
  %v160 = vsel %vm78, %v73, 0.0
  %161 = vadd.xlane.f32.xlu0 %v160
  %v162 = vpop.xlane.xlu0 %161
  %v163 = vsel %vm78, %v74, 0.0
  %164 = vadd.xlane.f32.xlu0 %v163
  %v165 = vpop.xlane.xlu0 %164
  %v166 = vsel %vm78, %v75, 0.0
  %167 = vadd.xlane.f32.xlu0 %v166
  %v168 = vpop.xlane.xlu0 %167
  %v169 = vsel %vm78, %v76, 0.0
  %170 = vadd.xlane.f32.xlu0 %v169
  %v171 = vpop.xlane.xlu0 %170
  %v172 = vsel %vm78, %v77, 0.0
  %173 = vadd.xlane.f32.xlu0 %v172
  %v174 = vpop.xlane.xlu0 %173
  %v175 = vrcp.pop 64.0
  %v176 = vmul.f32 %v81, %v175
  %v177 = vmul.f32 %v84, %v175
  %v178 = vmul.f32 %v87, %v175
  %v179 = vmul.f32 %v90, %v175
  %v180 = vmul.f32 %v93, %v175
  %v181 = vmul.f32 %v96, %v175
  %v182 = vmul.f32 %v99, %v175
  %v183 = vmul.f32 %v102, %v175
  %v184 = vmul.f32 %v105, %v175
  %v185 = vmul.f32 %v108, %v175
  %v186 = vmul.f32 %v111, %v175
  %v187 = vmul.f32 %v114, %v175
  %v188 = vmul.f32 %v117, %v175
  %v189 = vmul.f32 %v120, %v175
  %v190 = vmul.f32 %v123, %v175
  %v191 = vmul.f32 %v126, %v175
  %v192 = vmul.f32 %v129, %v175
  %v193 = vmul.f32 %v132, %v175
  %v194 = vmul.f32 %v135, %v175
  %v195 = vmul.f32 %v138, %v175
  %v196 = vmul.f32 %v141, %v175
  %v197 = vmul.f32 %v144, %v175
  %v198 = vmul.f32 %v147, %v175
  %v199 = vmul.f32 %v150, %v175
  %v200 = vmul.f32 %v153, %v175
  %v201 = vmul.f32 %v156, %v175
  %v202 = vmul.f32 %v159, %v175
  %v203 = vmul.f32 %v162, %v175
  %v204 = vmul.f32 %v165, %v175
  %v205 = vmul.f32 %v168, %v175
  %v206 = vmul.f32 %v171, %v175
  %v207 = vmul.f32 %v174, %v175
  %v208 = vld [vmem:[%s1] sm:$0xff]
  %v209 = vld [vmem:[%s1 + $0x8] sm:$0x3]
  %v210 = vld [vmem:[%s2] sm:$0xff]
  %v211 = vld [vmem:[%s2 + $0x8] sm:$0x3]
  %213 = vset.pattern.permute.xlu0 0
  %214 = vperm.xlu0 %213, %v210
  %v215 = vpop.permute.xlu0 %214
  %218 = vset.pattern.permute.xlu0 0
  %219 = vperm.xlu0 %218, %v211
  %v220 = vpop.permute.xlu0 %219
  %v254 = vlaneseq
  %v255 = vand.u32 %v254, 127
  %v256 = vlaneseq
  %v257 = vshrl.u32 %v256, 7
  %v258 = vsub.s32 %v255, %v257
  %v259 = vrot.slane %v176, %v258
  %v260 = vlaneseq
  %v261 = vshrl.u32 %v260, 7
  %v262 = vsub.s32 %v255, %v261
  %v263 = vrot.slane %v177, %v262
  %v264 = vlaneseq
  %v265 = vshrl.u32 %v264, 7
  %v266 = vsub.s32 %v255, %v265
  %v267 = vrot.slane %v178, %v266
  %v268 = vlaneseq
  %v269 = vshrl.u32 %v268, 7
  %v270 = vsub.s32 %v255, %v269
  %v271 = vrot.slane %v179, %v270
  %v272 = vlaneseq
  %v273 = vshrl.u32 %v272, 7
  %v274 = vsub.s32 %v255, %v273
  %v275 = vrot.slane %v180, %v274
  %v276 = vlaneseq
  %v277 = vshrl.u32 %v276, 7
  %v278 = vsub.s32 %v255, %v277
  %v279 = vrot.slane %v181, %v278
  %v280 = vlaneseq
  %v281 = vshrl.u32 %v280, 7
  %v282 = vsub.s32 %v255, %v281
  %v283 = vrot.slane %v182, %v282
  %v284 = vlaneseq
  %v285 = vshrl.u32 %v284, 7
  %v286 = vsub.s32 %v255, %v285
  %v287 = vrot.slane %v183, %v286
  %v288 = vlaneseq
  %v289 = vshrl.u32 %v288, 7
  %v290 = vsub.s32 %v255, %v289
  %v291 = vrot.slane %v184, %v290
  %v292 = vlaneseq
  %v293 = vshrl.u32 %v292, 7
  %v294 = vsub.s32 %v255, %v293
  %v295 = vrot.slane %v185, %v294
  %v296 = vlaneseq
  %v297 = vshrl.u32 %v296, 7
  %v298 = vsub.s32 %v255, %v297
  %v299 = vrot.slane %v186, %v298
  %v300 = vlaneseq
  %v301 = vshrl.u32 %v300, 7
  %v302 = vsub.s32 %v255, %v301
  %v303 = vrot.slane %v187, %v302
  %v304 = vlaneseq
  %v305 = vshrl.u32 %v304, 7
  %v306 = vsub.s32 %v255, %v305
  %v307 = vrot.slane %v188, %v306
  %v308 = vlaneseq
  %v309 = vshrl.u32 %v308, 7
  %v310 = vsub.s32 %v255, %v309
  %v311 = vrot.slane %v189, %v310
  %v312 = vlaneseq
  %v313 = vshrl.u32 %v312, 7
  %v314 = vsub.s32 %v255, %v313
  %v315 = vrot.slane %v190, %v314
  %v316 = vlaneseq
  %v317 = vshrl.u32 %v316, 7
  %v318 = vsub.s32 %v255, %v317
  %v319 = vrot.slane %v191, %v318
  %v320 = vlaneseq
  %v321 = vshrl.u32 %v320, 7
  %v322 = vsub.s32 %v255, %v321
  %v323 = vrot.slane %v192, %v322
  %v324 = vlaneseq
  %v325 = vshrl.u32 %v324, 7
  %v326 = vsub.s32 %v255, %v325
  %v327 = vrot.slane %v193, %v326
  %v328 = vlaneseq
  %v329 = vshrl.u32 %v328, 7
  %v330 = vsub.s32 %v255, %v329
  %v331 = vrot.slane %v194, %v330
  %v332 = vlaneseq
  %v333 = vshrl.u32 %v332, 7
  %v334 = vsub.s32 %v255, %v333
  %v335 = vrot.slane %v195, %v334
  %v336 = vlaneseq
  %v337 = vshrl.u32 %v336, 7
  %v338 = vsub.s32 %v255, %v337
  %v339 = vrot.slane %v196, %v338
  %v340 = vlaneseq
  %v341 = vshrl.u32 %v340, 7
  %v342 = vsub.s32 %v255, %v341
  %v343 = vrot.slane %v197, %v342
  %v344 = vlaneseq
  %v345 = vshrl.u32 %v344, 7
  %v346 = vsub.s32 %v255, %v345
  %v347 = vrot.slane %v198, %v346
  %v348 = vlaneseq
  %v349 = vshrl.u32 %v348, 7
  %v350 = vsub.s32 %v255, %v349
  %v351 = vrot.slane %v199, %v350
  %v352 = vlaneseq
  %v353 = vshrl.u32 %v352, 7
  %v354 = vsub.s32 %v255, %v353
  %v355 = vrot.slane %v200, %v354
  %v356 = vlaneseq
  %v357 = vshrl.u32 %v356, 7
  %v358 = vsub.s32 %v255, %v357
  %v359 = vrot.slane %v201, %v358
  %v360 = vlaneseq
  %v361 = vshrl.u32 %v360, 7
  %v362 = vsub.s32 %v255, %v361
  %v363 = vrot.slane %v202, %v362
  %v364 = vlaneseq
  %v365 = vshrl.u32 %v364, 7
  %v366 = vsub.s32 %v255, %v365
  %v367 = vrot.slane %v203, %v366
  %v368 = vlaneseq
  %v369 = vshrl.u32 %v368, 7
  %v370 = vsub.s32 %v255, %v369
  %v371 = vrot.slane %v204, %v370
  %v372 = vlaneseq
  %v373 = vshrl.u32 %v372, 7
  %v374 = vsub.s32 %v255, %v373
  %v375 = vrot.slane %v205, %v374
  %v376 = vlaneseq
  %v377 = vshrl.u32 %v376, 7
  %v378 = vsub.s32 %v255, %v377
  %v379 = vrot.slane %v206, %v378
  %v380 = vlaneseq
  %v381 = vshrl.u32 %v380, 7
  %v382 = vsub.s32 %v255, %v381
  %v383 = vrot.slane %v207, %v382
  %vm384 = vcmask 1041409
  %v385 = vsel %vm384, %v263, %v259
  %vm386 = vcmask 1042434
  %v387 = vsel %vm386, %v267, %v385
  %vm388 = vcmask 1043459
  %v389 = vsel %vm388, %v271, %v387
  %vm390 = vcmask 1044484
  %v391 = vsel %vm390, %v275, %v389
  %vm392 = vcmask 1045509
  %v393 = vsel %vm392, %v279, %v391
  %vm394 = vcmask 1046534
  %v395 = vsel %vm394, %v283, %v393
  %vm396 = vcmask 1047559
  %v397 = vsel %vm396, %v287, %v395
  %v398 = vsel %vm384, %v295, %v291
  %v399 = vsel %vm386, %v299, %v398
  %v400 = vsel %vm388, %v303, %v399
  %v401 = vsel %vm390, %v307, %v400
  %v402 = vsel %vm392, %v311, %v401
  %v403 = vsel %vm394, %v315, %v402
  %v404 = vsel %vm396, %v319, %v403
  %v405 = vsel %vm384, %v327, %v323
  %v406 = vsel %vm386, %v331, %v405
  %v407 = vsel %vm388, %v335, %v406
  %v408 = vsel %vm390, %v339, %v407
  %v409 = vsel %vm392, %v343, %v408
  %v410 = vsel %vm394, %v347, %v409
  %v411 = vsel %vm396, %v351, %v410
  %v412 = vsel %vm384, %v359, %v355
  %v413 = vsel %vm386, %v363, %v412
  %v414 = vsel %vm388, %v367, %v413
  %v415 = vsel %vm390, %v371, %v414
  %v416 = vsel %vm392, %v375, %v415
  %v417 = vsel %vm394, %v379, %v416
  %v418 = vsel %vm396, %v383, %v417
  %vm423 = vcmask 261120
  %v425 = vsel %vm423, %v208, 0
  %v428 = vsel %vm423, %v209, 0
  %430 = vmatprep.subr.mxu0 0.0
  %431 = vmatpush1.msra.mxu0 %v397
  %432 = vmatprep.subr.mxu0 0.0
  %433 = vmatpush1.msra.mxu0 %v404
  %434 = vmatprep.subr.mxu0 0.0
  %435 = vmatpush1.msra.mxu0 %v411
  %436 = vmatprep.subr.mxu0 0.0
  %437 = vmatpush1.msra.mxu0 %v418
  %438 = vmatprep.subr.mxu0 0.0
  %439 = vmatpush1.msra.mxu0 0.0
  %440 = vmatprep.subr.mxu0 0.0
  %441 = vmatpush1.msra.mxu0 0.0
  %442 = vmatprep.subr.mxu0 0.0
  %443 = vmatpush1.msra.mxu0 0.0
  %444 = vmatprep.subr.mxu0 0.0
  %445 = vmatpush1.msra.mxu0 0.0
  %446 = vmatprep.subr.mxu0 0.0
  %447 = vmatpush1.msra.mxu0 0.0
  %448 = vmatprep.subr.mxu0 0.0
  %449 = vmatpush1.msra.mxu0 0.0
  %450 = vmatprep.subr.mxu0 0.0
  %451 = vmatpush1.msra.mxu0 0.0
  %452 = vmatprep.subr.mxu0 0.0
  %453 = vmatpush1.msra.mxu0 0.0
  %454 = vmatprep.subr.mxu0 0.0
  %455 = vmatpush1.msra.mxu0 0.0
  %456 = vmatprep.subr.mxu0 0.0
  %457 = vmatpush1.msra.mxu0 0.0
  %458 = vmatprep.subr.mxu0 0.0
  %459 = vmatpush1.msra.mxu0 0.0
  %460 = vmatprep.subr.mxu0 0.0
  %461 = vmatpush1.msra.mxu0 0.0
  %462 = vmatprep.subr.mxu0 0.0
  %463 = vmatpush1.msra.mxu0 0.0
  %464 = vmatprep.subr.mxu0 0.0
  %465 = vmatpush1.msra.mxu0 0.0
  %466 = vmatprep.subr.mxu0 0.0
  %467 = vmatpush1.msra.mxu0 0.0
  %468 = vmatprep.subr.mxu0 0.0
  %469 = vmatpush1.msra.mxu0 0.0
  %470 = vmatprep.subr.mxu0 0.0
  %471 = vmatpush1.msra.mxu0 0.0
  %472 = vmatprep.subr.mxu0 0.0
  %473 = vmatpush1.msra.mxu0 0.0
  %474 = vmatprep.subr.mxu0 0.0
  %475 = vmatpush1.msra.mxu0 0.0
  %476 = vmatprep.subr.mxu0 0.0
  %477 = vmatpush1.msra.mxu0 0.0
  %478 = vmatprep.subr.mxu0 0.0
  %479 = vmatpush1.msra.mxu0 0.0
  %480 = vmatprep.subr.mxu0 0.0
  %481 = vmatpush1.msra.mxu0 0.0
  %482 = vmatprep.subr.mxu0 0.0
  %483 = vmatpush1.msra.mxu0 0.0
  %484 = vmatprep.subr.mxu0 0.0
  %485 = vmatpush1.msra.mxu0 0.0
  %486 = vmatprep.subr.mxu0 0.0
  %487 = vmatpush1.msra.mxu0 0.0
  %488 = vmatprep.subr.mxu0 0.0
  %489 = vmatpush1.msra.mxu0 0.0
  %490 = vmatprep.subr.mxu0 0.0
  %491 = vmatpush1.msra.mxu0 0.0
  %492 = vmatprep.subr.mxu0 0.0
  %493 = vmatpush1.msra.mxu0 0.0
  %494 = vmatprep.mubr.f32.mxu0 0.0
  %495 = vmatmul.mubr.f32.gmra.mrb[0].mxu0 %v425
  %v496 = vpop.f32.mrb[0].mxu0
  %v497 = vadd.f32 %v215, %v496
  %v498 = vpop.f32.mrb[0].mxu0
  %499 = vmatprep.mubr.f32.mxu0 0.0
  %500 = vmatmul.mubr.f32.gmra.mrb[0].mxu0 %v428
  %v501 = vpop.f32.mrb[0].mxu0
  %v502 = vadd.f32 %v220, %v501
  %v503 = vpop.f32.mrb[0].mxu0
  %504 = vdwg.mxu0
  %vm505 = vcmask 15360
  %506 = vst.msk [vmem:[%s3] sm:$0xff] %vm505, %v497
  %vm507 = vcmask 9216
  %508 = vst.msk [vmem:[%s3 + $0x8] sm:$0x3] %vm507, %v502
  // Predicated region
  $region14: #{cifar_rir_forward.11} parent=0 // pred_check
    _
  $region15: #{cifar_rir_forward.11} parent=0 // pred_check_branch
    %510 = sbr.rel (0) target = $region17
  $region16: #{cifar_rir_forward.11} parent=0 // pred_region
    _
  $region17: #{cifar_rir_forward.11} parent=0 // pred_fallthru
    _
  // Predicated region
  $region18: #{cifar_rir_forward.11} parent=0 // pred_check
    _
  $region19: #{cifar_rir_forward.11} parent=0 // pred_check_branch
    %512 = sbr.rel (0) target = $region21
  $region20: #{cifar_rir_forward.11} parent=0 // pred_region
    _
  $region21: #{cifar_rir_forward.11} parent=0 // pred_fallthru
    _

</llo_original>
